<compile_context>
chip_gen: v5e
topology: v5e:2x2
jax: 0.10.0
libtpu: 0.0.40
codegen_flags: <defaults>
</compile_context>

<pallas_src>
import functools
import jax
import jax.numpy as jnp
from jax.experimental import pallas as pl
from jax.experimental.pallas import tpu as pltpu  # noqa: F401  (kept for TPU-specific extensions)


# -----------------------------------------------------------------------------
# Fused forward kernel factory.
# Ref order: x2d, (w_ih_t, w_hh_t, bias) * num_layers, w_fc_t, b_fc, out.
# PyTorch gate order: i, f, g, o.
# -----------------------------------------------------------------------------
def _make_fused_kernel(num_layers, hidden_dim, batch, seq_len):
    H, B, T = hidden_dim, batch, seq_len

    def kernel(*refs):
        x_ref = refs[0]
        layer_refs = refs[1:1 + 3 * num_layers]
        w_fc_ref = refs[1 + 3 * num_layers]
        b_fc_ref = refs[2 + 3 * num_layers]
        o_ref = refs[3 + 3 * num_layers]

        inp = x_ref[...]                            # (T*B, D_in), time-major rows

        h = jnp.zeros((B, H), jnp.float32)
        for layer in range(num_layers):
            w_ih = layer_refs[3 * layer][...]       # (D_in, 4H)
            w_hh = layer_refs[3 * layer + 1][...]   # (H, 4H)
            bias = layer_refs[3 * layer + 2][...]   # (1, 4H)

            # Hoisted input projection: one wide 2D matmul for all T steps,
            # bias folded in.  (T*B, D) @ (D, 4H) -> (T*B, 4H)
            gx = jnp.dot(inp, w_ih, preferred_element_type=jnp.float32) + bias

            h = jnp.zeros((B, H), jnp.float32)
            c = jnp.zeros((B, H), jnp.float32)
            hs = []
            # Static unroll over time (T is small); only the recurrent matmul
            # + elementwise gate math sit on the serial critical path.
            for t in range(T):
                # Sublane-aligned static row slice of the precomputed gates.
                gates = gx[t * B:(t + 1) * B, :] + jnp.dot(
                    h, w_hh, preferred_element_type=jnp.float32
                )                                   # (B, 4H)

                # Lane-dense activation over the packed 128-lane gates block.
                sig = jax.nn.sigmoid(gates)
                i_g = sig[:, 0 * H:1 * H]
                f_g = sig[:, 1 * H:2 * H]
                o_g = sig[:, 3 * H:4 * H]
                g_g = jnp.tanh(gates[:, 2 * H:3 * H])

                c = f_g * c + i_g * g_g
                h = o_g * jnp.tanh(c)
                if layer < num_layers - 1:
                    hs.append(h)

            if layer < num_layers - 1:
                # Next layer's time-major input; stays in VMEM/regs, never
                # written back to HBM.
                inp = jnp.concatenate(hs, axis=0)   # (T*B, H)

        # Fused FC head on the last hidden state only: (B,H)@(H,1)+b -> (B,1)
        out = jnp.dot(h, w_fc_ref[...], preferred_element_type=jnp.float32)
        o_ref[...] = out + b_fc_ref[...]

    return kernel


# -----------------------------------------------------------------------------
# Wrapper: single pallas_call over the whole forward. All operands fit VMEM
# trivially on v5e/v6e/v7x, so full-array blocks with no grid.
# -----------------------------------------------------------------------------
@functools.partial(jax.jit, static_argnames=("num_layers",))
def bike_sharing_rnn_forward(x, params, num_layers):
    B, T, D = x.shape
    H = params["lstm"][0][1].shape[0]

    # Time-major, flattened 2D input: rows [t*B:(t+1)*B] are time step t.
    x2d = jnp.transpose(x, (1, 0, 2)).reshape(T * B, D)

    inputs = [x2d]
    in_specs = [pl.BlockSpec((T * B, D), lambda: (0, 0))]
    for layer in range(num_layers):
        w_ih_t, w_hh_t, bias = params["lstm"][layer]
        inputs += [w_ih_t, w_hh_t, bias]
        in_specs += [
            pl.BlockSpec(w_ih_t.shape, lambda: (0, 0)),
            pl.BlockSpec(w_hh_t.shape, lambda: (0, 0)),
            pl.BlockSpec(bias.shape, lambda: (0, 0)),
        ]
    w_fc_t, b_fc = params["fc"]
    inputs += [w_fc_t, b_fc]
    in_specs += [
        pl.BlockSpec(w_fc_t.shape, lambda: (0, 0)),
        pl.BlockSpec(b_fc.shape, lambda: (0, 0)),
    ]

    kernel = _make_fused_kernel(num_layers, H, B, T)
    return pl.pallas_call(
        kernel,
        out_shape=jax.ShapeDtypeStruct((B, 1), jnp.float32),
        in_specs=in_specs,
        out_specs=pl.BlockSpec((B, 1), lambda: (0, 0)),
    )(*inputs)


# -----------------------------------------------------------------------------
# Deterministic parameter init (PyTorch default: U(-1/sqrt(H), 1/sqrt(H))).
# Weights pre-transposed, biases pre-summed for the kernel.
# -----------------------------------------------------------------------------
def init_params(key, input_dim, hidden_dim, num_layers):
    bound = 1.0 / jnp.sqrt(jnp.float32(hidden_dim))
    params = {"lstm": []}
    for layer in range(num_layers):
        in_dim = input_dim if layer == 0 else hidden_dim
        key, k1, k2, k3, k4 = jax.random.split(key, 5)
        w_ih = jax.random.uniform(k1, (4 * hidden_dim, in_dim), jnp.float32, -bound, bound)
        w_hh = jax.random.uniform(k2, (4 * hidden_dim, hidden_dim), jnp.float32, -bound, bound)
        b_ih = jax.random.uniform(k3, (4 * hidden_dim,), jnp.float32, -bound, bound)
        b_hh = jax.random.uniform(k4, (4 * hidden_dim,), jnp.float32, -bound, bound)
        params["lstm"].append((w_ih.T, w_hh.T, (b_ih + b_hh)[None, :]))
    key, k5, k6 = jax.random.split(key, 3)
    w_fc = jax.random.uniform(k5, (1, hidden_dim), jnp.float32, -bound, bound)
    b_fc = jax.random.uniform(k6, (1,), jnp.float32, -bound, bound)
    params["fc"] = (w_fc.T, b_fc[None, :])
    return params


# -----------------------------------------------------------------------------
# Pure-JAX reference (lax.scan LSTM) for a correctness sanity check
# -----------------------------------------------------------------------------
def reference_forward(x, params, num_layers, hidden_dim):
    B = x.shape[0]
    h_seq = jnp.transpose(x, (1, 0, 2))
    for layer in range(num_layers):
        w_ih_t, w_hh_t, bias = params["lstm"][layer]

        def step(carry, x_t):
            h, c = carry
            gates = x_t @ w_ih_t + h @ w_hh_t + bias
            i = jax.nn.sigmoid(gates[:, 0 * hidden_dim:1 * hidden_dim])
            f = jax.nn.sigmoid(gates[:, 1 * hidden_dim:2 * hidden_dim])
            g = jnp.tanh(gates[:, 2 * hidden_dim:3 * hidden_dim])
            o = jax.nn.sigmoid(gates[:, 3 * hidden_dim:4 * hidden_dim])
            c = f * c + i * g
            h = o * jnp.tanh(c)
            return (h, c), h

        init = (jnp.zeros((B, hidden_dim), jnp.float32),
                jnp.zeros((B, hidden_dim), jnp.float32))
        _, h_seq = jax.lax.scan(step, init, h_seq)
    w_fc_t, b_fc = params["fc"]
    return h_seq[-1] @ w_fc_t + b_fc


if __name__ == "__main__":
    # TODO(synk): dataset loading / pandas-based custom_transformations are host-side
    # preprocessing, not part of the forward pass — replaced by random features here.
    batch, seq_len, input_dim, hidden_dim, num_layers = 8, 8, 16, 32, 2

    key = jax.random.PRNGKey(0)
    key, kx = jax.random.split(key)
    x = jax.random.normal(kx, (batch, seq_len, input_dim), dtype=jnp.float32)

    params = init_params(key, input_dim, hidden_dim, num_layers)

    out = bike_sharing_rnn_forward(x, params, num_layers)
    out = jax.block_until_ready(out)

    ref = reference_forward(x, params, num_layers, hidden_dim)
    assert out.shape == (batch, 1)
    assert jnp.allclose(out, ref, rtol=1e-4, atol=1e-4), "mismatch vs reference"

    print("KERNEL_OK")
</pallas_src>

<mosaic_0001>
module attributes {stable_mosaic.version = 11 : i64} {
  func.func @kernel(%arg0: memref<64x16xf32, #tpu.memory_space<vmem>>, %arg1: memref<16x128xf32, #tpu.memory_space<vmem>>, %arg2: memref<32x128xf32, #tpu.memory_space<vmem>>, %arg3: memref<1x128xf32, #tpu.memory_space<vmem>>, %arg4: memref<32x128xf32, #tpu.memory_space<vmem>>, %arg5: memref<32x128xf32, #tpu.memory_space<vmem>>, %arg6: memref<1x128xf32, #tpu.memory_space<vmem>>, %arg7: memref<32x1xf32, #tpu.memory_space<vmem>>, %arg8: memref<1x1xf32, #tpu.memory_space<vmem>>, %arg9: memref<8x1xf32, #tpu.memory_space<vmem>>) attributes {dimension_semantics = [], scalar_prefetch = 0 : i64, scratch_operands = 0 : i64, tpu.core_type = #tpu.core_type<tc>} {
    %c0 = arith.constant 0 : index
    %c0_0 = arith.constant 0 : index
    %0 = vector.load %arg0[%c0, %c0_0] : memref<64x16xf32, #tpu.memory_space<vmem>>, vector<64x16xf32>
    %c0_1 = arith.constant 0 : index
    %c0_2 = arith.constant 0 : index
    %1 = vector.load %arg1[%c0_1, %c0_2] : memref<16x128xf32, #tpu.memory_space<vmem>>, vector<16x128xf32>
    %c0_3 = arith.constant 0 : index
    %c0_4 = arith.constant 0 : index
    %2 = vector.load %arg2[%c0_3, %c0_4] : memref<32x128xf32, #tpu.memory_space<vmem>>, vector<32x128xf32>
    %c0_5 = arith.constant 0 : index
    %c0_6 = arith.constant 0 : index
    %3 = vector.load %arg3[%c0_5, %c0_6] : memref<1x128xf32, #tpu.memory_space<vmem>>, vector<1x128xf32>
    %cst = arith.constant dense<0.000000e+00> : vector<64x128xf32>
    %4 = tpu.matmul %0, %1, %cst {dimension_numbers = #tpu.dot_dimension_numbers<[1], [0], [0], [1], [0, 0, 1, 1], [], []>} : vector<64x16xf32>, vector<16x128xf32>, vector<64x128xf32> -> vector<64x128xf32>
    %5 = vector.broadcast %3 : vector<1x128xf32> to vector<64x128xf32>
    %6 = arith.addf %4, %5 : vector<64x128xf32>
    %cst_7 = arith.constant 0.000000e+00 : f32
    %7 = vector.broadcast %cst_7 : f32 to vector<8x32xf32>
    %cst_8 = arith.constant 0.000000e+00 : f32
    %8 = vector.broadcast %cst_8 : f32 to vector<8x32xf32>
    %9 = vector.extract_strided_slice %6 {offsets = [0, 0], sizes = [8, 128], strides = [1, 1]} : vector<64x128xf32> to vector<8x128xf32>
    %cst_9 = arith.constant dense<0.000000e+00> : vector<8x128xf32>
    %10 = tpu.matmul %7, %2, %cst_9 {dimension_numbers = #tpu.dot_dimension_numbers<[1], [0], [0], [1], [0, 0, 1, 1], [], []>} : vector<8x32xf32>, vector<32x128xf32>, vector<8x128xf32> -> vector<8x128xf32>
    %11 = arith.addf %9, %10 : vector<8x128xf32>
    %12 = arith.negf %11 : vector<8x128xf32>
    %13 = math.exp %12 : vector<8x128xf32>
    %cst_10 = arith.constant 1.000000e+00 : f32
    %14 = vector.broadcast %cst_10 : f32 to vector<8x128xf32>
    %15 = arith.addf %14, %13 : vector<8x128xf32>
    %16 = arith.divf %14, %15 : vector<8x128xf32>
    %17 = vector.extract_strided_slice %16 {offsets = [0, 0], sizes = [8, 32], strides = [1, 1]} : vector<8x128xf32> to vector<8x32xf32>
    %18 = vector.extract_strided_slice %16 {offsets = [0, 32], sizes = [8, 32], strides = [1, 1]} : vector<8x128xf32> to vector<8x32xf32>
    %19 = vector.extract_strided_slice %16 {offsets = [0, 96], sizes = [8, 32], strides = [1, 1]} : vector<8x128xf32> to vector<8x32xf32>
    %20 = vector.extract_strided_slice %11 {offsets = [0, 64], sizes = [8, 32], strides = [1, 1]} : vector<8x128xf32> to vector<8x32xf32>
    %21 = math.tanh %20 : vector<8x32xf32>
    %22 = arith.mulf %18, %8 : vector<8x32xf32>
    %23 = arith.mulf %17, %21 : vector<8x32xf32>
    %24 = arith.addf %22, %23 : vector<8x32xf32>
    %25 = math.tanh %24 : vector<8x32xf32>
    %26 = arith.mulf %19, %25 : vector<8x32xf32>
    %27 = vector.extract_strided_slice %6 {offsets = [8, 0], sizes = [8, 128], strides = [1, 1]} : vector<64x128xf32> to vector<8x128xf32>
    %cst_11 = arith.constant dense<0.000000e+00> : vector<8x128xf32>
    %28 = tpu.matmul %26, %2, %cst_11 {dimension_numbers = #tpu.dot_dimension_numbers<[1], [0], [0], [1], [0, 0, 1, 1], [], []>} : vector<8x32xf32>, vector<32x128xf32>, vector<8x128xf32> -> vector<8x128xf32>
    %29 = arith.addf %27, %28 : vector<8x128xf32>
    %30 = arith.negf %29 : vector<8x128xf32>
    %31 = math.exp %30 : vector<8x128xf32>
    %cst_12 = arith.constant 1.000000e+00 : f32
    %32 = vector.broadcast %cst_12 : f32 to vector<8x128xf32>
    %33 = arith.addf %32, %31 : vector<8x128xf32>
    %34 = arith.divf %32, %33 : vector<8x128xf32>
    %35 = vector.extract_strided_slice %34 {offsets = [0, 0], sizes = [8, 32], strides = [1, 1]} : vector<8x128xf32> to vector<8x32xf32>
    %36 = vector.extract_strided_slice %34 {offsets = [0, 32], sizes = [8, 32], strides = [1, 1]} : vector<8x128xf32> to vector<8x32xf32>
    %37 = vector.extract_strided_slice %34 {offsets = [0, 96], sizes = [8, 32], strides = [1, 1]} : vector<8x128xf32> to vector<8x32xf32>
    %38 = vector.extract_strided_slice %29 {offsets = [0, 64], sizes = [8, 32], strides = [1, 1]} : vector<8x128xf32> to vector<8x32xf32>
    %39 = math.tanh %38 : vector<8x32xf32>
    %40 = arith.mulf %36, %24 : vector<8x32xf32>
    %41 = arith.mulf %35, %39 : vector<8x32xf32>
    %42 = arith.addf %40, %41 : vector<8x32xf32>
    %43 = math.tanh %42 : vector<8x32xf32>
    %44 = arith.mulf %37, %43 : vector<8x32xf32>
    %45 = vector.extract_strided_slice %6 {offsets = [16, 0], sizes = [8, 128], strides = [1, 1]} : vector<64x128xf32> to vector<8x128xf32>
    %cst_13 = arith.constant dense<0.000000e+00> : vector<8x128xf32>
    %46 = tpu.matmul %44, %2, %cst_13 {dimension_numbers = #tpu.dot_dimension_numbers<[1], [0], [0], [1], [0, 0, 1, 1], [], []>} : vector<8x32xf32>, vector<32x128xf32>, vector<8x128xf32> -> vector<8x128xf32>
    %47 = arith.addf %45, %46 : vector<8x128xf32>
    %48 = arith.negf %47 : vector<8x128xf32>
    %49 = math.exp %48 : vector<8x128xf32>
    %cst_14 = arith.constant 1.000000e+00 : f32
    %50 = vector.broadcast %cst_14 : f32 to vector<8x128xf32>
    %51 = arith.addf %50, %49 : vector<8x128xf32>
    %52 = arith.divf %50, %51 : vector<8x128xf32>
    %53 = vector.extract_strided_slice %52 {offsets = [0, 0], sizes = [8, 32], strides = [1, 1]} : vector<8x128xf32> to vector<8x32xf32>
    %54 = vector.extract_strided_slice %52 {offsets = [0, 32], sizes = [8, 32], strides = [1, 1]} : vector<8x128xf32> to vector<8x32xf32>
    %55 = vector.extract_strided_slice %52 {offsets = [0, 96], sizes = [8, 32], strides = [1, 1]} : vector<8x128xf32> to vector<8x32xf32>
    %56 = vector.extract_strided_slice %47 {offsets = [0, 64], sizes = [8, 32], strides = [1, 1]} : vector<8x128xf32> to vector<8x32xf32>
    %57 = math.tanh %56 : vector<8x32xf32>
    %58 = arith.mulf %54, %42 : vector<8x32xf32>
    %59 = arith.mulf %53, %57 : vector<8x32xf32>
    %60 = arith.addf %58, %59 : vector<8x32xf32>
    %61 = math.tanh %60 : vector<8x32xf32>
    %62 = arith.mulf %55, %61 : vector<8x32xf32>
    %63 = vector.extract_strided_slice %6 {offsets = [24, 0], sizes = [8, 128], strides = [1, 1]} : vector<64x128xf32> to vector<8x128xf32>
    %cst_15 = arith.constant dense<0.000000e+00> : vector<8x128xf32>
    %64 = tpu.matmul %62, %2, %cst_15 {dimension_numbers = #tpu.dot_dimension_numbers<[1], [0], [0], [1], [0, 0, 1, 1], [], []>} : vector<8x32xf32>, vector<32x128xf32>, vector<8x128xf32> -> vector<8x128xf32>
    %65 = arith.addf %63, %64 : vector<8x128xf32>
    %66 = arith.negf %65 : vector<8x128xf32>
    %67 = math.exp %66 : vector<8x128xf32>
    %cst_16 = arith.constant 1.000000e+00 : f32
    %68 = vector.broadcast %cst_16 : f32 to vector<8x128xf32>
    %69 = arith.addf %68, %67 : vector<8x128xf32>
    %70 = arith.divf %68, %69 : vector<8x128xf32>
    %71 = vector.extract_strided_slice %70 {offsets = [0, 0], sizes = [8, 32], strides = [1, 1]} : vector<8x128xf32> to vector<8x32xf32>
    %72 = vector.extract_strided_slice %70 {offsets = [0, 32], sizes = [8, 32], strides = [1, 1]} : vector<8x128xf32> to vector<8x32xf32>
    %73 = vector.extract_strided_slice %70 {offsets = [0, 96], sizes = [8, 32], strides = [1, 1]} : vector<8x128xf32> to vector<8x32xf32>
    %74 = vector.extract_strided_slice %65 {offsets = [0, 64], sizes = [8, 32], strides = [1, 1]} : vector<8x128xf32> to vector<8x32xf32>
    %75 = math.tanh %74 : vector<8x32xf32>
    %76 = arith.mulf %72, %60 : vector<8x32xf32>
    %77 = arith.mulf %71, %75 : vector<8x32xf32>
    %78 = arith.addf %76, %77 : vector<8x32xf32>
    %79 = math.tanh %78 : vector<8x32xf32>
    %80 = arith.mulf %73, %79 : vector<8x32xf32>
    %81 = vector.extract_strided_slice %6 {offsets = [32, 0], sizes = [8, 128], strides = [1, 1]} : vector<64x128xf32> to vector<8x128xf32>
    %cst_17 = arith.constant dense<0.000000e+00> : vector<8x128xf32>
    %82 = tpu.matmul %80, %2, %cst_17 {dimension_numbers = #tpu.dot_dimension_numbers<[1], [0], [0], [1], [0, 0, 1, 1], [], []>} : vector<8x32xf32>, vector<32x128xf32>, vector<8x128xf32> -> vector<8x128xf32>
    %83 = arith.addf %81, %82 : vector<8x128xf32>
    %84 = arith.negf %83 : vector<8x128xf32>
    %85 = math.exp %84 : vector<8x128xf32>
    %cst_18 = arith.constant 1.000000e+00 : f32
    %86 = vector.broadcast %cst_18 : f32 to vector<8x128xf32>
    %87 = arith.addf %86, %85 : vector<8x128xf32>
    %88 = arith.divf %86, %87 : vector<8x128xf32>
    %89 = vector.extract_strided_slice %88 {offsets = [0, 0], sizes = [8, 32], strides = [1, 1]} : vector<8x128xf32> to vector<8x32xf32>
    %90 = vector.extract_strided_slice %88 {offsets = [0, 32], sizes = [8, 32], strides = [1, 1]} : vector<8x128xf32> to vector<8x32xf32>
    %91 = vector.extract_strided_slice %88 {offsets = [0, 96], sizes = [8, 32], strides = [1, 1]} : vector<8x128xf32> to vector<8x32xf32>
    %92 = vector.extract_strided_slice %83 {offsets = [0, 64], sizes = [8, 32], strides = [1, 1]} : vector<8x128xf32> to vector<8x32xf32>
    %93 = math.tanh %92 : vector<8x32xf32>
    %94 = arith.mulf %90, %78 : vector<8x32xf32>
    %95 = arith.mulf %89, %93 : vector<8x32xf32>
    %96 = arith.addf %94, %95 : vector<8x32xf32>
    %97 = math.tanh %96 : vector<8x32xf32>
    %98 = arith.mulf %91, %97 : vector<8x32xf32>
    %99 = vector.extract_strided_slice %6 {offsets = [40, 0], sizes = [8, 128], strides = [1, 1]} : vector<64x128xf32> to vector<8x128xf32>
    %cst_19 = arith.constant dense<0.000000e+00> : vector<8x128xf32>
    %100 = tpu.matmul %98, %2, %cst_19 {dimension_numbers = #tpu.dot_dimension_numbers<[1], [0], [0], [1], [0, 0, 1, 1], [], []>} : vector<8x32xf32>, vector<32x128xf32>, vector<8x128xf32> -> vector<8x128xf32>
    %101 = arith.addf %99, %100 : vector<8x128xf32>
    %102 = arith.negf %101 : vector<8x128xf32>
    %103 = math.exp %102 : vector<8x128xf32>
    %cst_20 = arith.constant 1.000000e+00 : f32
    %104 = vector.broadcast %cst_20 : f32 to vector<8x128xf32>
    %105 = arith.addf %104, %103 : vector<8x128xf32>
    %106 = arith.divf %104, %105 : vector<8x128xf32>
    %107 = vector.extract_strided_slice %106 {offsets = [0, 0], sizes = [8, 32], strides = [1, 1]} : vector<8x128xf32> to vector<8x32xf32>
    %108 = vector.extract_strided_slice %106 {offsets = [0, 32], sizes = [8, 32], strides = [1, 1]} : vector<8x128xf32> to vector<8x32xf32>
    %109 = vector.extract_strided_slice %106 {offsets = [0, 96], sizes = [8, 32], strides = [1, 1]} : vector<8x128xf32> to vector<8x32xf32>
    %110 = vector.extract_strided_slice %101 {offsets = [0, 64], sizes = [8, 32], strides = [1, 1]} : vector<8x128xf32> to vector<8x32xf32>
    %111 = math.tanh %110 : vector<8x32xf32>
    %112 = arith.mulf %108, %96 : vector<8x32xf32>
    %113 = arith.mulf %107, %111 : vector<8x32xf32>
    %114 = arith.addf %112, %113 : vector<8x32xf32>
    %115 = math.tanh %114 : vector<8x32xf32>
    %116 = arith.mulf %109, %115 : vector<8x32xf32>
    %117 = vector.extract_strided_slice %6 {offsets = [48, 0], sizes = [8, 128], strides = [1, 1]} : vector<64x128xf32> to vector<8x128xf32>
    %cst_21 = arith.constant dense<0.000000e+00> : vector<8x128xf32>
    %118 = tpu.matmul %116, %2, %cst_21 {dimension_numbers = #tpu.dot_dimension_numbers<[1], [0], [0], [1], [0, 0, 1, 1], [], []>} : vector<8x32xf32>, vector<32x128xf32>, vector<8x128xf32> -> vector<8x128xf32>
    %119 = arith.addf %117, %118 : vector<8x128xf32>
    %120 = arith.negf %119 : vector<8x128xf32>
    %121 = math.exp %120 : vector<8x128xf32>
    %cst_22 = arith.constant 1.000000e+00 : f32
    %122 = vector.broadcast %cst_22 : f32 to vector<8x128xf32>
    %123 = arith.addf %122, %121 : vector<8x128xf32>
    %124 = arith.divf %122, %123 : vector<8x128xf32>
    %125 = vector.extract_strided_slice %124 {offsets = [0, 0], sizes = [8, 32], strides = [1, 1]} : vector<8x128xf32> to vector<8x32xf32>
    %126 = vector.extract_strided_slice %124 {offsets = [0, 32], sizes = [8, 32], strides = [1, 1]} : vector<8x128xf32> to vector<8x32xf32>
    %127 = vector.extract_strided_slice %124 {offsets = [0, 96], sizes = [8, 32], strides = [1, 1]} : vector<8x128xf32> to vector<8x32xf32>
    %128 = vector.extract_strided_slice %119 {offsets = [0, 64], sizes = [8, 32], strides = [1, 1]} : vector<8x128xf32> to vector<8x32xf32>
    %129 = math.tanh %128 : vector<8x32xf32>
    %130 = arith.mulf %126, %114 : vector<8x32xf32>
    %131 = arith.mulf %125, %129 : vector<8x32xf32>
    %132 = arith.addf %130, %131 : vector<8x32xf32>
    %133 = math.tanh %132 : vector<8x32xf32>
    %134 = arith.mulf %127, %133 : vector<8x32xf32>
    %135 = vector.extract_strided_slice %6 {offsets = [56, 0], sizes = [8, 128], strides = [1, 1]} : vector<64x128xf32> to vector<8x128xf32>
    %cst_23 = arith.constant dense<0.000000e+00> : vector<8x128xf32>
    %136 = tpu.matmul %134, %2, %cst_23 {dimension_numbers = #tpu.dot_dimension_numbers<[1], [0], [0], [1], [0, 0, 1, 1], [], []>} : vector<8x32xf32>, vector<32x128xf32>, vector<8x128xf32> -> vector<8x128xf32>
    %137 = arith.addf %135, %136 : vector<8x128xf32>
    %138 = arith.negf %137 : vector<8x128xf32>
    %139 = math.exp %138 : vector<8x128xf32>
    %cst_24 = arith.constant 1.000000e+00 : f32
    %140 = vector.broadcast %cst_24 : f32 to vector<8x128xf32>
    %141 = arith.addf %140, %139 : vector<8x128xf32>
    %142 = arith.divf %140, %141 : vector<8x128xf32>
    %143 = vector.extract_strided_slice %142 {offsets = [0, 0], sizes = [8, 32], strides = [1, 1]} : vector<8x128xf32> to vector<8x32xf32>
    %144 = vector.extract_strided_slice %142 {offsets = [0, 32], sizes = [8, 32], strides = [1, 1]} : vector<8x128xf32> to vector<8x32xf32>
    %145 = vector.extract_strided_slice %142 {offsets = [0, 96], sizes = [8, 32], strides = [1, 1]} : vector<8x128xf32> to vector<8x32xf32>
    %146 = vector.extract_strided_slice %137 {offsets = [0, 64], sizes = [8, 32], strides = [1, 1]} : vector<8x128xf32> to vector<8x32xf32>
    %147 = math.tanh %146 : vector<8x32xf32>
    %148 = arith.mulf %144, %132 : vector<8x32xf32>
    %149 = arith.mulf %143, %147 : vector<8x32xf32>
    %150 = arith.addf %148, %149 : vector<8x32xf32>
    %151 = math.tanh %150 : vector<8x32xf32>
    %152 = arith.mulf %145, %151 : vector<8x32xf32>
    %153 = tpu.concatenate %26, %44, %62, %80, %98, %116, %134, %152 in 0 : vector<8x32xf32>, vector<8x32xf32>, vector<8x32xf32>, vector<8x32xf32>, vector<8x32xf32>, vector<8x32xf32>, vector<8x32xf32>, vector<8x32xf32> -> vector<64x32xf32>
    %c0_25 = arith.constant 0 : index
    %c0_26 = arith.constant 0 : index
    %154 = vector.load %arg4[%c0_25, %c0_26] : memref<32x128xf32, #tpu.memory_space<vmem>>, vector<32x128xf32>
    %c0_27 = arith.constant 0 : index
    %c0_28 = arith.constant 0 : index
    %155 = vector.load %arg5[%c0_27, %c0_28] : memref<32x128xf32, #tpu.memory_space<vmem>>, vector<32x128xf32>
    %c0_29 = arith.constant 0 : index
    %c0_30 = arith.constant 0 : index
    %156 = vector.load %arg6[%c0_29, %c0_30] : memref<1x128xf32, #tpu.memory_space<vmem>>, vector<1x128xf32>
    %cst_31 = arith.constant dense<0.000000e+00> : vector<64x128xf32>
    %157 = tpu.matmul %153, %154, %cst_31 {dimension_numbers = #tpu.dot_dimension_numbers<[1], [0], [0], [1], [0, 0, 1, 1], [], []>} : vector<64x32xf32>, vector<32x128xf32>, vector<64x128xf32> -> vector<64x128xf32>
    %158 = vector.broadcast %156 : vector<1x128xf32> to vector<64x128xf32>
    %159 = arith.addf %157, %158 : vector<64x128xf32>
    %cst_32 = arith.constant 0.000000e+00 : f32
    %160 = vector.broadcast %cst_32 : f32 to vector<8x32xf32>
    %cst_33 = arith.constant 0.000000e+00 : f32
    %161 = vector.broadcast %cst_33 : f32 to vector<8x32xf32>
    %162 = vector.extract_strided_slice %159 {offsets = [0, 0], sizes = [8, 128], strides = [1, 1]} : vector<64x128xf32> to vector<8x128xf32>
    %cst_34 = arith.constant dense<0.000000e+00> : vector<8x128xf32>
    %163 = tpu.matmul %160, %155, %cst_34 {dimension_numbers = #tpu.dot_dimension_numbers<[1], [0], [0], [1], [0, 0, 1, 1], [], []>} : vector<8x32xf32>, vector<32x128xf32>, vector<8x128xf32> -> vector<8x128xf32>
    %164 = arith.addf %162, %163 : vector<8x128xf32>
    %165 = arith.negf %164 : vector<8x128xf32>
    %166 = math.exp %165 : vector<8x128xf32>
    %cst_35 = arith.constant 1.000000e+00 : f32
    %167 = vector.broadcast %cst_35 : f32 to vector<8x128xf32>
    %168 = arith.addf %167, %166 : vector<8x128xf32>
    %169 = arith.divf %167, %168 : vector<8x128xf32>
    %170 = vector.extract_strided_slice %169 {offsets = [0, 0], sizes = [8, 32], strides = [1, 1]} : vector<8x128xf32> to vector<8x32xf32>
    %171 = vector.extract_strided_slice %169 {offsets = [0, 32], sizes = [8, 32], strides = [1, 1]} : vector<8x128xf32> to vector<8x32xf32>
    %172 = vector.extract_strided_slice %169 {offsets = [0, 96], sizes = [8, 32], strides = [1, 1]} : vector<8x128xf32> to vector<8x32xf32>
    %173 = vector.extract_strided_slice %164 {offsets = [0, 64], sizes = [8, 32], strides = [1, 1]} : vector<8x128xf32> to vector<8x32xf32>
    %174 = math.tanh %173 : vector<8x32xf32>
    %175 = arith.mulf %171, %161 : vector<8x32xf32>
    %176 = arith.mulf %170, %174 : vector<8x32xf32>
    %177 = arith.addf %175, %176 : vector<8x32xf32>
    %178 = math.tanh %177 : vector<8x32xf32>
    %179 = arith.mulf %172, %178 : vector<8x32xf32>
    %180 = vector.extract_strided_slice %159 {offsets = [8, 0], sizes = [8, 128], strides = [1, 1]} : vector<64x128xf32> to vector<8x128xf32>
    %cst_36 = arith.constant dense<0.000000e+00> : vector<8x128xf32>
    %181 = tpu.matmul %179, %155, %cst_36 {dimension_numbers = #tpu.dot_dimension_numbers<[1], [0], [0], [1], [0, 0, 1, 1], [], []>} : vector<8x32xf32>, vector<32x128xf32>, vector<8x128xf32> -> vector<8x128xf32>
    %182 = arith.addf %180, %181 : vector<8x128xf32>
    %183 = arith.negf %182 : vector<8x128xf32>
    %184 = math.exp %183 : vector<8x128xf32>
    %cst_37 = arith.constant 1.000000e+00 : f32
    %185 = vector.broadcast %cst_37 : f32 to vector<8x128xf32>
    %186 = arith.addf %185, %184 : vector<8x128xf32>
    %187 = arith.divf %185, %186 : vector<8x128xf32>
    %188 = vector.extract_strided_slice %187 {offsets = [0, 0], sizes = [8, 32], strides = [1, 1]} : vector<8x128xf32> to vector<8x32xf32>
    %189 = vector.extract_strided_slice %187 {offsets = [0, 32], sizes = [8, 32], strides = [1, 1]} : vector<8x128xf32> to vector<8x32xf32>
    %190 = vector.extract_strided_slice %187 {offsets = [0, 96], sizes = [8, 32], strides = [1, 1]} : vector<8x128xf32> to vector<8x32xf32>
    %191 = vector.extract_strided_slice %182 {offsets = [0, 64], sizes = [8, 32], strides = [1, 1]} : vector<8x128xf32> to vector<8x32xf32>
    %192 = math.tanh %191 : vector<8x32xf32>
    %193 = arith.mulf %189, %177 : vector<8x32xf32>
    %194 = arith.mulf %188, %192 : vector<8x32xf32>
    %195 = arith.addf %193, %194 : vector<8x32xf32>
    %196 = math.tanh %195 : vector<8x32xf32>
    %197 = arith.mulf %190, %196 : vector<8x32xf32>
    %198 = vector.extract_strided_slice %159 {offsets = [16, 0], sizes = [8, 128], strides = [1, 1]} : vector<64x128xf32> to vector<8x128xf32>
    %cst_38 = arith.constant dense<0.000000e+00> : vector<8x128xf32>
    %199 = tpu.matmul %197, %155, %cst_38 {dimension_numbers = #tpu.dot_dimension_numbers<[1], [0], [0], [1], [0, 0, 1, 1], [], []>} : vector<8x32xf32>, vector<32x128xf32>, vector<8x128xf32> -> vector<8x128xf32>
    %200 = arith.addf %198, %199 : vector<8x128xf32>
    %201 = arith.negf %200 : vector<8x128xf32>
    %202 = math.exp %201 : vector<8x128xf32>
    %cst_39 = arith.constant 1.000000e+00 : f32
    %203 = vector.broadcast %cst_39 : f32 to vector<8x128xf32>
    %204 = arith.addf %203, %202 : vector<8x128xf32>
    %205 = arith.divf %203, %204 : vector<8x128xf32>
    %206 = vector.extract_strided_slice %205 {offsets = [0, 0], sizes = [8, 32], strides = [1, 1]} : vector<8x128xf32> to vector<8x32xf32>
    %207 = vector.extract_strided_slice %205 {offsets = [0, 32], sizes = [8, 32], strides = [1, 1]} : vector<8x128xf32> to vector<8x32xf32>
    %208 = vector.extract_strided_slice %205 {offsets = [0, 96], sizes = [8, 32], strides = [1, 1]} : vector<8x128xf32> to vector<8x32xf32>
    %209 = vector.extract_strided_slice %200 {offsets = [0, 64], sizes = [8, 32], strides = [1, 1]} : vector<8x128xf32> to vector<8x32xf32>
    %210 = math.tanh %209 : vector<8x32xf32>
    %211 = arith.mulf %207, %195 : vector<8x32xf32>
    %212 = arith.mulf %206, %210 : vector<8x32xf32>
    %213 = arith.addf %211, %212 : vector<8x32xf32>
    %214 = math.tanh %213 : vector<8x32xf32>
    %215 = arith.mulf %208, %214 : vector<8x32xf32>
    %216 = vector.extract_strided_slice %159 {offsets = [24, 0], sizes = [8, 128], strides = [1, 1]} : vector<64x128xf32> to vector<8x128xf32>
    %cst_40 = arith.constant dense<0.000000e+00> : vector<8x128xf32>
    %217 = tpu.matmul %215, %155, %cst_40 {dimension_numbers = #tpu.dot_dimension_numbers<[1], [0], [0], [1], [0, 0, 1, 1], [], []>} : vector<8x32xf32>, vector<32x128xf32>, vector<8x128xf32> -> vector<8x128xf32>
    %218 = arith.addf %216, %217 : vector<8x128xf32>
    %219 = arith.negf %218 : vector<8x128xf32>
    %220 = math.exp %219 : vector<8x128xf32>
    %cst_41 = arith.constant 1.000000e+00 : f32
    %221 = vector.broadcast %cst_41 : f32 to vector<8x128xf32>
    %222 = arith.addf %221, %220 : vector<8x128xf32>
    %223 = arith.divf %221, %222 : vector<8x128xf32>
    %224 = vector.extract_strided_slice %223 {offsets = [0, 0], sizes = [8, 32], strides = [1, 1]} : vector<8x128xf32> to vector<8x32xf32>
    %225 = vector.extract_strided_slice %223 {offsets = [0, 32], sizes = [8, 32], strides = [1, 1]} : vector<8x128xf32> to vector<8x32xf32>
    %226 = vector.extract_strided_slice %223 {offsets = [0, 96], sizes = [8, 32], strides = [1, 1]} : vector<8x128xf32> to vector<8x32xf32>
    %227 = vector.extract_strided_slice %218 {offsets = [0, 64], sizes = [8, 32], strides = [1, 1]} : vector<8x128xf32> to vector<8x32xf32>
    %228 = math.tanh %227 : vector<8x32xf32>
    %229 = arith.mulf %225, %213 : vector<8x32xf32>
    %230 = arith.mulf %224, %228 : vector<8x32xf32>
    %231 = arith.addf %229, %230 : vector<8x32xf32>
    %232 = math.tanh %231 : vector<8x32xf32>
    %233 = arith.mulf %226, %232 : vector<8x32xf32>
    %234 = vector.extract_strided_slice %159 {offsets = [32, 0], sizes = [8, 128], strides = [1, 1]} : vector<64x128xf32> to vector<8x128xf32>
    %cst_42 = arith.constant dense<0.000000e+00> : vector<8x128xf32>
    %235 = tpu.matmul %233, %155, %cst_42 {dimension_numbers = #tpu.dot_dimension_numbers<[1], [0], [0], [1], [0, 0, 1, 1], [], []>} : vector<8x32xf32>, vector<32x128xf32>, vector<8x128xf32> -> vector<8x128xf32>
    %236 = arith.addf %234, %235 : vector<8x128xf32>
    %237 = arith.negf %236 : vector<8x128xf32>
    %238 = math.exp %237 : vector<8x128xf32>
    %cst_43 = arith.constant 1.000000e+00 : f32
    %239 = vector.broadcast %cst_43 : f32 to vector<8x128xf32>
    %240 = arith.addf %239, %238 : vector<8x128xf32>
    %241 = arith.divf %239, %240 : vector<8x128xf32>
    %242 = vector.extract_strided_slice %241 {offsets = [0, 0], sizes = [8, 32], strides = [1, 1]} : vector<8x128xf32> to vector<8x32xf32>
    %243 = vector.extract_strided_slice %241 {offsets = [0, 32], sizes = [8, 32], strides = [1, 1]} : vector<8x128xf32> to vector<8x32xf32>
    %244 = vector.extract_strided_slice %241 {offsets = [0, 96], sizes = [8, 32], strides = [1, 1]} : vector<8x128xf32> to vector<8x32xf32>
    %245 = vector.extract_strided_slice %236 {offsets = [0, 64], sizes = [8, 32], strides = [1, 1]} : vector<8x128xf32> to vector<8x32xf32>
    %246 = math.tanh %245 : vector<8x32xf32>
    %247 = arith.mulf %243, %231 : vector<8x32xf32>
    %248 = arith.mulf %242, %246 : vector<8x32xf32>
    %249 = arith.addf %247, %248 : vector<8x32xf32>
    %250 = math.tanh %249 : vector<8x32xf32>
    %251 = arith.mulf %244, %250 : vector<8x32xf32>
    %252 = vector.extract_strided_slice %159 {offsets = [40, 0], sizes = [8, 128], strides = [1, 1]} : vector<64x128xf32> to vector<8x128xf32>
    %cst_44 = arith.constant dense<0.000000e+00> : vector<8x128xf32>
    %253 = tpu.matmul %251, %155, %cst_44 {dimension_numbers = #tpu.dot_dimension_numbers<[1], [0], [0], [1], [0, 0, 1, 1], [], []>} : vector<8x32xf32>, vector<32x128xf32>, vector<8x128xf32> -> vector<8x128xf32>
    %254 = arith.addf %252, %253 : vector<8x128xf32>
    %255 = arith.negf %254 : vector<8x128xf32>
    %256 = math.exp %255 : vector<8x128xf32>
    %cst_45 = arith.constant 1.000000e+00 : f32
    %257 = vector.broadcast %cst_45 : f32 to vector<8x128xf32>
    %258 = arith.addf %257, %256 : vector<8x128xf32>
    %259 = arith.divf %257, %258 : vector<8x128xf32>
    %260 = vector.extract_strided_slice %259 {offsets = [0, 0], sizes = [8, 32], strides = [1, 1]} : vector<8x128xf32> to vector<8x32xf32>
    %261 = vector.extract_strided_slice %259 {offsets = [0, 32], sizes = [8, 32], strides = [1, 1]} : vector<8x128xf32> to vector<8x32xf32>
    %262 = vector.extract_strided_slice %259 {offsets = [0, 96], sizes = [8, 32], strides = [1, 1]} : vector<8x128xf32> to vector<8x32xf32>
    %263 = vector.extract_strided_slice %254 {offsets = [0, 64], sizes = [8, 32], strides = [1, 1]} : vector<8x128xf32> to vector<8x32xf32>
    %264 = math.tanh %263 : vector<8x32xf32>
    %265 = arith.mulf %261, %249 : vector<8x32xf32>
    %266 = arith.mulf %260, %264 : vector<8x32xf32>
    %267 = arith.addf %265, %266 : vector<8x32xf32>
    %268 = math.tanh %267 : vector<8x32xf32>
    %269 = arith.mulf %262, %268 : vector<8x32xf32>
    %270 = vector.extract_strided_slice %159 {offsets = [48, 0], sizes = [8, 128], strides = [1, 1]} : vector<64x128xf32> to vector<8x128xf32>
    %cst_46 = arith.constant dense<0.000000e+00> : vector<8x128xf32>
    %271 = tpu.matmul %269, %155, %cst_46 {dimension_numbers = #tpu.dot_dimension_numbers<[1], [0], [0], [1], [0, 0, 1, 1], [], []>} : vector<8x32xf32>, vector<32x128xf32>, vector<8x128xf32> -> vector<8x128xf32>
    %272 = arith.addf %270, %271 : vector<8x128xf32>
    %273 = arith.negf %272 : vector<8x128xf32>
    %274 = math.exp %273 : vector<8x128xf32>
    %cst_47 = arith.constant 1.000000e+00 : f32
    %275 = vector.broadcast %cst_47 : f32 to vector<8x128xf32>
    %276 = arith.addf %275, %274 : vector<8x128xf32>
    %277 = arith.divf %275, %276 : vector<8x128xf32>
    %278 = vector.extract_strided_slice %277 {offsets = [0, 0], sizes = [8, 32], strides = [1, 1]} : vector<8x128xf32> to vector<8x32xf32>
    %279 = vector.extract_strided_slice %277 {offsets = [0, 32], sizes = [8, 32], strides = [1, 1]} : vector<8x128xf32> to vector<8x32xf32>
    %280 = vector.extract_strided_slice %277 {offsets = [0, 96], sizes = [8, 32], strides = [1, 1]} : vector<8x128xf32> to vector<8x32xf32>
    %281 = vector.extract_strided_slice %272 {offsets = [0, 64], sizes = [8, 32], strides = [1, 1]} : vector<8x128xf32> to vector<8x32xf32>
    %282 = math.tanh %281 : vector<8x32xf32>
    %283 = arith.mulf %279, %267 : vector<8x32xf32>
    %284 = arith.mulf %278, %282 : vector<8x32xf32>
    %285 = arith.addf %283, %284 : vector<8x32xf32>
    %286 = math.tanh %285 : vector<8x32xf32>
    %287 = arith.mulf %280, %286 : vector<8x32xf32>
    %288 = vector.extract_strided_slice %159 {offsets = [56, 0], sizes = [8, 128], strides = [1, 1]} : vector<64x128xf32> to vector<8x128xf32>
    %cst_48 = arith.constant dense<0.000000e+00> : vector<8x128xf32>
    %289 = tpu.matmul %287, %155, %cst_48 {dimension_numbers = #tpu.dot_dimension_numbers<[1], [0], [0], [1], [0, 0, 1, 1], [], []>} : vector<8x32xf32>, vector<32x128xf32>, vector<8x128xf32> -> vector<8x128xf32>
    %290 = arith.addf %288, %289 : vector<8x128xf32>
    %291 = arith.negf %290 : vector<8x128xf32>
    %292 = math.exp %291 : vector<8x128xf32>
    %cst_49 = arith.constant 1.000000e+00 : f32
    %293 = vector.broadcast %cst_49 : f32 to vector<8x128xf32>
    %294 = arith.addf %293, %292 : vector<8x128xf32>
    %295 = arith.divf %293, %294 : vector<8x128xf32>
    %296 = vector.extract_strided_slice %295 {offsets = [0, 0], sizes = [8, 32], strides = [1, 1]} : vector<8x128xf32> to vector<8x32xf32>
    %297 = vector.extract_strided_slice %295 {offsets = [0, 32], sizes = [8, 32], strides = [1, 1]} : vector<8x128xf32> to vector<8x32xf32>
    %298 = vector.extract_strided_slice %295 {offsets = [0, 96], sizes = [8, 32], strides = [1, 1]} : vector<8x128xf32> to vector<8x32xf32>
    %299 = vector.extract_strided_slice %290 {offsets = [0, 64], sizes = [8, 32], strides = [1, 1]} : vector<8x128xf32> to vector<8x32xf32>
    %300 = math.tanh %299 : vector<8x32xf32>
    %301 = arith.mulf %297, %285 : vector<8x32xf32>
    %302 = arith.mulf %296, %300 : vector<8x32xf32>
    %303 = arith.addf %301, %302 : vector<8x32xf32>
    %304 = math.tanh %303 : vector<8x32xf32>
    %305 = arith.mulf %298, %304 : vector<8x32xf32>
    %c0_50 = arith.constant 0 : index
    %c0_51 = arith.constant 0 : index
    %306 = vector.load %arg7[%c0_50, %c0_51] : memref<32x1xf32, #tpu.memory_space<vmem>>, vector<32x1xf32>
    %cst_52 = arith.constant dense<0.000000e+00> : vector<8x1xf32>
    %307 = tpu.matmul %305, %306, %cst_52 {dimension_numbers = #tpu.dot_dimension_numbers<[1], [0], [0], [1], [0, 0, 1, 1], [], []>} : vector<8x32xf32>, vector<32x1xf32>, vector<8x1xf32> -> vector<8x1xf32>
    %c0_53 = arith.constant 0 : index
    %c0_54 = arith.constant 0 : index
    %308 = vector.load %arg8[%c0_53, %c0_54] : memref<1x1xf32, #tpu.memory_space<vmem>>, vector<1x1xf32>
    %309 = vector.broadcast %308 : vector<1x1xf32> to vector<8x1xf32>
    %310 = arith.addf %307, %309 : vector<8x1xf32>
    %c0_55 = arith.constant 0 : index
    %c0_56 = arith.constant 0 : index
    %311 = vector.load %arg9[%c0_55, %c0_56] : memref<8x1xf32, #tpu.memory_space<vmem>>, vector<8x1xf32>
    tpu.vector_store %arg9[%c0_55, %c0_56], %310 {strides = array<i32>} : memref<8x1xf32, #tpu.memory_space<vmem>>, vector<8x1xf32>,
    return
  }
}

</mosaic_0001>

<llo_original>
// kernel: bike_sharing_rnn_forward.1
$region0: #{bike_sharing_rnn_forward.1}
  #allocation0 [shape = 'u32[]', space=smem, size = 0x4, offset = 0x4, fixed_abs, tag = 'smem constant byte address 0x4 - core index']
  #allocation1 [shape = 'u32[72,128]{1,0:T(1,128)}', space=vmem, size = 0x9000, scoped, tag = 'internal scratch']
  #allocation2 [shape = 'f32[1,1]{1,0:T(1,128)S(1)}', space=vmem, size = 0x200, scoped, tag = 'scoped memory for bike_sharing_rnn_forward.1']
  %s0 = inlined_call_operand.vmem [shape: f32[64,16], index: 0, kind: input, shape index: {}]
  %s1 = inlined_call_operand.vmem [shape: f32[16,128], index: 1, kind: input, shape index: {}]
  %s2 = inlined_call_operand.vmem [shape: f32[32,128], index: 2, kind: input, shape index: {}]
  %s3 = inlined_call_operand.vmem [shape: f32[1,128], index: 3, kind: input, shape index: {}]
  %s4 = inlined_call_operand.vmem [shape: f32[32,128], index: 4, kind: input, shape index: {}]
  %s5 = inlined_call_operand.vmem [shape: f32[32,128], index: 5, kind: input, shape index: {}]
  %s6 = inlined_call_operand.vmem [shape: f32[1,128], index: 6, kind: input, shape index: {}]
  %s7 = inlined_call_operand.vmem [shape: f32[32,1], index: 7, kind: input, shape index: {}]
  %s8 = inlined_call_operand.<no memory space> [shape: f32[1,1], index: 8, kind: input, shape index: {}]
  %s9 = inlined_call_operand.vmem [shape: f32[8,1], index: 9, kind: output, shape index: {}]
  %s10 = sld [smem:[#allocation0]]
  $region46: #{bike_sharing_rnn_forward.1} parent=0
    _
  %s12 = ssub.s32 1, %s10
  %s13 = scalar_select 0, %s12, %s10
  %v14 = vstv %s8
  %15 = vst [vmem:[#allocation2] sm:$0x1] %v14
  // Predicated region
  $region2: #{bike_sharing_rnn_forward.1} parent=0 // pred_check
    _
  $region3: #{bike_sharing_rnn_forward.1} parent=0 // pred_check_branch
    %17 = sbr.rel (0) target = $region5
  $region4: #{bike_sharing_rnn_forward.1} parent=0 // pred_region
    _
  $region5: #{bike_sharing_rnn_forward.1} parent=0 // pred_fallthru
    _
  // Predicated region
  $region6: #{bike_sharing_rnn_forward.1} parent=0 // pred_check
    _
  $region7: #{bike_sharing_rnn_forward.1} parent=0 // pred_check_branch
    %19 = sbr.rel (0) target = $region9
  $region8: #{bike_sharing_rnn_forward.1} parent=0 // pred_region
    _
  $region9: #{bike_sharing_rnn_forward.1} parent=0 // pred_fallthru
    _
  // Predicated region
  $region10: #{bike_sharing_rnn_forward.1} parent=0 // pred_check
    _
  $region11: #{bike_sharing_rnn_forward.1} parent=0 // pred_check_branch
    %21 = sbr.rel (0) target = $region13
  $region12: #{bike_sharing_rnn_forward.1} parent=0 // pred_region
    _
  $region13: #{bike_sharing_rnn_forward.1} parent=0 // pred_fallthru
    _
  // Predicated region
  $region14: #{bike_sharing_rnn_forward.1} parent=0 // pred_check
    _
  $region15: #{bike_sharing_rnn_forward.1} parent=0 // pred_check_branch
    %23 = sbr.rel (0) target = $region17
  $region16: #{bike_sharing_rnn_forward.1} parent=0 // pred_region
    _
  $region17: #{bike_sharing_rnn_forward.1} parent=0 // pred_fallthru
    _
  // Predicated region
  $region18: #{bike_sharing_rnn_forward.1} parent=0 // pred_check
    _
  $region19: #{bike_sharing_rnn_forward.1} parent=0 // pred_check_branch
    %25 = sbr.rel (0) target = $region21
  $region20: #{bike_sharing_rnn_forward.1} parent=0 // pred_region
    _
  $region21: #{bike_sharing_rnn_forward.1} parent=0 // pred_fallthru
    _
  // Predicated region
  $region22: #{bike_sharing_rnn_forward.1} parent=0 // pred_check
    _
  $region23: #{bike_sharing_rnn_forward.1} parent=0 // pred_check_branch
    %27 = sbr.rel (0) target = $region25
  $region24: #{bike_sharing_rnn_forward.1} parent=0 // pred_region
    _
  $region25: #{bike_sharing_rnn_forward.1} parent=0 // pred_fallthru
    _
  // Predicated region
  $region26: #{bike_sharing_rnn_forward.1} parent=0 // pred_check
    _
  $region27: #{bike_sharing_rnn_forward.1} parent=0 // pred_check_branch
    %29 = sbr.rel (0) target = $region29
  $region28: #{bike_sharing_rnn_forward.1} parent=0 // pred_region
    _
  $region29: #{bike_sharing_rnn_forward.1} parent=0 // pred_fallthru
    _
  // Predicated region
  $region30: #{bike_sharing_rnn_forward.1} parent=0 // pred_check
    _
  $region31: #{bike_sharing_rnn_forward.1} parent=0 // pred_check_branch
    %31 = sbr.rel (0) target = $region33
  $region32: #{bike_sharing_rnn_forward.1} parent=0 // pred_region
    _
  $region33: #{bike_sharing_rnn_forward.1} parent=0 // pred_fallthru
    _
  // Predicated region
  $region34: #{bike_sharing_rnn_forward.1} parent=0 // pred_check
    _
  $region35: #{bike_sharing_rnn_forward.1} parent=0 // pred_check_branch
    %33 = sbr.rel (0) target = $region37
  $region36: #{bike_sharing_rnn_forward.1} parent=0 // pred_region
    _
  $region37: #{bike_sharing_rnn_forward.1} parent=0 // pred_fallthru
    _
  %v34 = vld [vmem:[%s0] sm:$0xff]
  %v35 = vld [vmem:[%s0 + $0x8] sm:$0xff]
  %v36 = vld [vmem:[%s0 + $0x10] sm:$0xff]
  %v37 = vld [vmem:[%s0 + $0x18] sm:$0xff]
  %v38 = vld [vmem:[%s0 + $0x20] sm:$0xff]
  %v39 = vld [vmem:[%s0 + $0x28] sm:$0xff]
  %v40 = vld [vmem:[%s0 + $0x30] sm:$0xff]
  %v41 = vld [vmem:[%s0 + $0x38] sm:$0xff]
  %v42 = vld [vmem:[%s1] sm:$0xff]
  %v43 = vld [vmem:[%s1 + $0x8] sm:$0xff]
  %v44 = vld [vmem:[%s2] sm:$0xff]
  %v45 = vld [vmem:[%s2 + $0x8] sm:$0xff]
  %v46 = vld [vmem:[%s2 + $0x10] sm:$0xff]
  %v47 = vld [vmem:[%s2 + $0x18] sm:$0xff]
  %v48 = vld [vmem:[%s3] sm:$0x1]
  %v50 = vperm.slane %v48, 0
  %vm52 = vcmask 130048
  %v54 = vsel %vm52, %v34, 0
  %v57 = vsel %vm52, %v35, 0
  %v60 = vsel %vm52, %v36, 0
  %v63 = vsel %vm52, %v37, 0
  %v66 = vsel %vm52, %v38, 0
  %v69 = vsel %vm52, %v39, 0
  %v72 = vsel %vm52, %v40, 0
  %v75 = vsel %vm52, %v41, 0
  %77 = vmatpush.msra.mxu0 0.0
  %78 = vmatpush.msra.mxu0 0.0
  %79 = vmatpush.msra.mxu0 0.0
  %80 = vmatpush.msra.mxu0 0.0
  %81 = vmatpush.msra.mxu0 0.0
  %82 = vmatpush.msra.mxu0 0.0
  %83 = vmatpush.msra.mxu0 0.0
  %84 = vmatpush.msra.mxu0 0.0
  %85 = vmatpush.msra.mxu0 0.0
  %86 = vmatpush.msra.mxu0 0.0
  %87 = vmatpush.msra.mxu0 0.0
  %88 = vmatpush.msra.mxu0 0.0
  %89 = vmatpush.msra.mxu0 0.0
  %90 = vmatpush.msra.mxu0 0.0
  %91 = vmatpush.msra.mxu0 %v43
  %92 = vmatpush.msra.mxu0 %v42
  %93 = vmatmul.f32.gmra.mxu0 %v54
  %v94 = vpop.f32.mrf.mxu0
  %v95 = vadd.f32 %v50, %v94
  %96 = vmatmul.f32.gmra.mxu0 %v57
  %v97 = vpop.f32.mrf.mxu0
  %v98 = vadd.f32 %v50, %v97
  %99 = vmatmul.f32.gmra.mxu0 %v60
  %v100 = vpop.f32.mrf.mxu0
  %v101 = vadd.f32 %v50, %v100
  %102 = vmatmul.f32.gmra.mxu0 %v63
  %v103 = vpop.f32.mrf.mxu0
  %v104 = vadd.f32 %v50, %v103
  %105 = vmatmul.f32.gmra.mxu0 %v66
  %v106 = vpop.f32.mrf.mxu0
  %v107 = vadd.f32 %v50, %v106
  %108 = vmatmul.f32.gmra.mxu0 %v69
  %v109 = vpop.f32.mrf.mxu0
  %v110 = vadd.f32 %v50, %v109
  %111 = vmatmul.f32.gmra.mxu0 %v72
  %v112 = vpop.f32.mrf.mxu0
  %v113 = vadd.f32 %v50, %v112
  %114 = vmatmul.f32.gmra.mxu0 %v75
  %v115 = vpop.f32.mrf.mxu0
  %v116 = vadd.f32 %v50, %v115
  %117 = vdwg.mxu0
  %vm118 = vcmask 261120
  %v120 = vsel %vm118, 0.0, 0
  %122 = vmatpush.msra.mxu0 0.0
  %123 = vmatpush.msra.mxu0 0.0
  %124 = vmatpush.msra.mxu0 0.0
  %125 = vmatpush.msra.mxu0 0.0
  %126 = vmatpush.msra.mxu0 0.0
  %127 = vmatpush.msra.mxu0 0.0
  %128 = vmatpush.msra.mxu0 0.0
  %129 = vmatpush.msra.mxu0 0.0
  %130 = vmatpush.msra.mxu0 0.0
  %131 = vmatpush.msra.mxu0 0.0
  %132 = vmatpush.msra.mxu0 0.0
  %133 = vmatpush.msra.mxu0 0.0
  %134 = vmatpush.msra.mxu0 %v47
  %135 = vmatpush.msra.mxu0 %v46
  %136 = vmatpush.msra.mxu0 %v45
  %137 = vmatpush.msra.mxu0 %v44
  %138 = vmatmul.f32.gmra.mxu0 %v120
  %v139 = vpop.f32.mrf.mxu0
  %v140 = vadd.f32 0.0, %v139
  %141 = vdwg.mxu0
  %v142 = vadd.f32 %v95, %v140
  %v143 = vxor.u32 %v142, 2147483648
  %v144 = vmul.f32 %v143, 1.442695
  %v145 = vpow.pop %v144
  %v146 = vadd.f32 %v145, 1.0
  %v147 = vrcp.pop %v146
  %v148 = vmul.f32 %v146, %v147
  %v149 = vsub.f32 1.0, %v148
  %v150 = vmul.f32 %v147, %v149
  %v151 = vadd.f32 %v147, %v150
  %vm152 = vweird.f32 %v146
  %vm153 = vweird.f32 %v147
  %vm154 = vmor %vm152, %vm153
  %v155 = vsel %vm154, %v147, %v151
  %v156 = vand.u32 2147483647, %v146
  %vm157 = vcmp.eq.f32.partialorder %v156, 8.507059e+37
  %v158 = vand.u32 %v146, 2147483648
  %v159 = vor.u32 1.1754944e-38, %v158
  %v160 = vsel %vm157, %v159, %v155
  %v161 = vmul.f32 1.0, %v160
  %v162 = vtanh.pop %v142
  %v163 = vmul.f32 %v161, 0.0
  %165 = vrot.lane.b32.xlu0 %v162, 64
  %v166 = vpop.permute.xlu0 %165
  %v168 = vmul.f32 %v161, %v166
  %170 = vrot.lane.b32.xlu0 %v168, 32
  %v171 = vpop.permute.xlu0 %170
  %v173 = vadd.f32 %v163, %v171
  %v174 = vtanh.pop %v173
  %176 = vrot.lane.b32.xlu0 %v174, 64
  %v177 = vpop.permute.xlu0 %176
  %v179 = vmul.f32 %v161, %v177
  %181 = vrot.lane.b32.xlu0 %v179, 32
  %v182 = vpop.permute.xlu0 %181
  %v183 = vsel %vm118, %v182, 0
  %185 = vmatpush.msra.mxu0 0.0
  %186 = vmatpush.msra.mxu0 0.0
  %187 = vmatpush.msra.mxu0 0.0
  %188 = vmatpush.msra.mxu0 0.0
  %189 = vmatpush.msra.mxu0 0.0
  %190 = vmatpush.msra.mxu0 0.0
  %191 = vmatpush.msra.mxu0 0.0
  %192 = vmatpush.msra.mxu0 0.0
  %193 = vmatpush.msra.mxu0 0.0
  %194 = vmatpush.msra.mxu0 0.0
  %195 = vmatpush.msra.mxu0 0.0
  %196 = vmatpush.msra.mxu0 0.0
  %197 = vmatpush.msra.mxu0 %v47
  %198 = vmatpush.msra.mxu0 %v46
  %199 = vmatpush.msra.mxu0 %v45
  %200 = vmatpush.msra.mxu0 %v44
  %201 = vmatmul.f32.gmra.mxu0 %v183
  %v202 = vpop.f32.mrf.mxu0
  %v203 = vadd.f32 0.0, %v202
  %204 = vdwg.mxu0
  %v205 = vadd.f32 %v98, %v203
  %v206 = vxor.u32 %v205, 2147483648
  %v207 = vmul.f32 %v206, 1.442695
  %v208 = vpow.pop %v207
  %v209 = vadd.f32 %v208, 1.0
  %v210 = vrcp.pop %v209
  %v211 = vmul.f32 %v209, %v210
  %v212 = vsub.f32 1.0, %v211
  %v213 = vmul.f32 %v210, %v212
  %v214 = vadd.f32 %v210, %v213
  %vm215 = vweird.f32 %v209
  %vm216 = vweird.f32 %v210
  %vm217 = vmor %vm215, %vm216
  %v218 = vsel %vm217, %v210, %v214
  %v219 = vand.u32 2147483647, %v209
  %vm220 = vcmp.eq.f32.partialorder %v219, 8.507059e+37
  %v221 = vand.u32 %v209, 2147483648
  %v222 = vor.u32 1.1754944e-38, %v221
  %v223 = vsel %vm220, %v222, %v218
  %v224 = vmul.f32 1.0, %v223
  %v225 = vtanh.pop %v205
  %v226 = vmul.f32 %v224, %v173
  %228 = vrot.lane.b32.xlu0 %v225, 64
  %v229 = vpop.permute.xlu0 %228
  %v231 = vmul.f32 %v224, %v229
  %233 = vrot.lane.b32.xlu0 %v231, 32
  %v234 = vpop.permute.xlu0 %233
  %v236 = vadd.f32 %v226, %v234
  %v237 = vtanh.pop %v236
  %239 = vrot.lane.b32.xlu0 %v237, 64
  %v240 = vpop.permute.xlu0 %239
  %v242 = vmul.f32 %v224, %v240
  %244 = vrot.lane.b32.xlu0 %v242, 32
  %v245 = vpop.permute.xlu0 %244
  %v246 = vsel %vm118, %v245, 0
  %248 = vmatpush.msra.mxu0 0.0
  %249 = vmatpush.msra.mxu0 0.0
  %250 = vmatpush.msra.mxu0 0.0
  %251 = vmatpush.msra.mxu0 0.0
  %252 = vmatpush.msra.mxu0 0.0
  %253 = vmatpush.msra.mxu0 0.0
  %254 = vmatpush.msra.mxu0 0.0
  %255 = vmatpush.msra.mxu0 0.0
  %256 = vmatpush.msra.mxu0 0.0
  %257 = vmatpush.msra.mxu0 0.0
  %258 = vmatpush.msra.mxu0 0.0
  %259 = vmatpush.msra.mxu0 0.0
  %260 = vmatpush.msra.mxu0 %v47
  %261 = vmatpush.msra.mxu0 %v46
  %262 = vmatpush.msra.mxu0 %v45
  %263 = vmatpush.msra.mxu0 %v44
  %264 = vmatmul.f32.gmra.mxu0 %v246
  %v265 = vpop.f32.mrf.mxu0
  %v266 = vadd.f32 0.0, %v265
  %267 = vdwg.mxu0
  %v268 = vadd.f32 %v101, %v266
  %v269 = vxor.u32 %v268, 2147483648
  %v270 = vmul.f32 %v269, 1.442695
  %v271 = vpow.pop %v270
  %v272 = vadd.f32 %v271, 1.0
  %v273 = vrcp.pop %v272
  %v274 = vmul.f32 %v272, %v273
  %v275 = vsub.f32 1.0, %v274
  %v276 = vmul.f32 %v273, %v275
  %v277 = vadd.f32 %v273, %v276
  %vm278 = vweird.f32 %v272
  %vm279 = vweird.f32 %v273
  %vm280 = vmor %vm278, %vm279
  %v281 = vsel %vm280, %v273, %v277
  %v282 = vand.u32 2147483647, %v272
  %vm283 = vcmp.eq.f32.partialorder %v282, 8.507059e+37
  %v284 = vand.u32 %v272, 2147483648
  %v285 = vor.u32 1.1754944e-38, %v284
  %v286 = vsel %vm283, %v285, %v281
  %v287 = vmul.f32 1.0, %v286
  %v288 = vtanh.pop %v268
  %v289 = vmul.f32 %v287, %v236
  %291 = vrot.lane.b32.xlu0 %v288, 64
  %v292 = vpop.permute.xlu0 %291
  %v294 = vmul.f32 %v287, %v292
  %296 = vrot.lane.b32.xlu0 %v294, 32
  %v297 = vpop.permute.xlu0 %296
  %v299 = vadd.f32 %v289, %v297
  %v300 = vtanh.pop %v299
  %302 = vrot.lane.b32.xlu0 %v300, 64
  %v303 = vpop.permute.xlu0 %302
  %v305 = vmul.f32 %v287, %v303
  %307 = vrot.lane.b32.xlu0 %v305, 32
  %v308 = vpop.permute.xlu0 %307
  %v309 = vsel %vm118, %v308, 0
  %311 = vmatpush.msra.mxu0 0.0
  %312 = vmatpush.msra.mxu0 0.0
  %313 = vmatpush.msra.mxu0 0.0
  %314 = vmatpush.msra.mxu0 0.0
  %315 = vmatpush.msra.mxu0 0.0
  %316 = vmatpush.msra.mxu0 0.0
  %317 = vmatpush.msra.mxu0 0.0
  %318 = vmatpush.msra.mxu0 0.0
  %319 = vmatpush.msra.mxu0 0.0
  %320 = vmatpush.msra.mxu0 0.0
  %321 = vmatpush.msra.mxu0 0.0
  %322 = vmatpush.msra.mxu0 0.0
  %323 = vmatpush.msra.mxu0 %v47
  %324 = vmatpush.msra.mxu0 %v46
  %325 = vmatpush.msra.mxu0 %v45
  %326 = vmatpush.msra.mxu0 %v44
  %327 = vmatmul.f32.gmra.mxu0 %v309
  %v328 = vpop.f32.mrf.mxu0
  %v329 = vadd.f32 0.0, %v328
  %330 = vdwg.mxu0
  %v331 = vadd.f32 %v104, %v329
  %v332 = vxor.u32 %v331, 2147483648
  %v333 = vmul.f32 %v332, 1.442695
  %v334 = vpow.pop %v333
  %v335 = vadd.f32 %v334, 1.0
  %v336 = vrcp.pop %v335
  %v337 = vmul.f32 %v335, %v336
  %v338 = vsub.f32 1.0, %v337
  %v339 = vmul.f32 %v336, %v338
  %v340 = vadd.f32 %v336, %v339
  %vm341 = vweird.f32 %v335
  %vm342 = vweird.f32 %v336
  %vm343 = vmor %vm341, %vm342
  %v344 = vsel %vm343, %v336, %v340
  %v345 = vand.u32 2147483647, %v335
  %vm346 = vcmp.eq.f32.partialorder %v345, 8.507059e+37
  %v347 = vand.u32 %v335, 2147483648
  %v348 = vor.u32 1.1754944e-38, %v347
  %v349 = vsel %vm346, %v348, %v344
  %v350 = vmul.f32 1.0, %v349
  %v351 = vtanh.pop %v331
  %v352 = vmul.f32 %v350, %v299
  %354 = vrot.lane.b32.xlu0 %v351, 64
  %v355 = vpop.permute.xlu0 %354
  %v357 = vmul.f32 %v350, %v355
  %359 = vrot.lane.b32.xlu0 %v357, 32
  %v360 = vpop.permute.xlu0 %359
  %v362 = vadd.f32 %v352, %v360
  %v363 = vtanh.pop %v362
  %365 = vrot.lane.b32.xlu0 %v363, 64
  %v366 = vpop.permute.xlu0 %365
  %v368 = vmul.f32 %v350, %v366
  %370 = vrot.lane.b32.xlu0 %v368, 32
  %v371 = vpop.permute.xlu0 %370
  %v372 = vsel %vm118, %v371, 0
  %374 = vmatpush.msra.mxu0 0.0
  %375 = vmatpush.msra.mxu0 0.0
  %376 = vmatpush.msra.mxu0 0.0
  %377 = vmatpush.msra.mxu0 0.0
  %378 = vmatpush.msra.mxu0 0.0
  %379 = vmatpush.msra.mxu0 0.0
  %380 = vmatpush.msra.mxu0 0.0
  %381 = vmatpush.msra.mxu0 0.0
  %382 = vmatpush.msra.mxu0 0.0
  %383 = vmatpush.msra.mxu0 0.0
  %384 = vmatpush.msra.mxu0 0.0
  %385 = vmatpush.msra.mxu0 0.0
  %386 = vmatpush.msra.mxu0 %v47
  %387 = vmatpush.msra.mxu0 %v46
  %388 = vmatpush.msra.mxu0 %v45
  %389 = vmatpush.msra.mxu0 %v44
  %390 = vmatmul.f32.gmra.mxu0 %v372
  %v391 = vpop.f32.mrf.mxu0
  %v392 = vadd.f32 0.0, %v391
  %393 = vdwg.mxu0
  %v394 = vadd.f32 %v107, %v392
  %v395 = vxor.u32 %v394, 2147483648
  %v396 = vmul.f32 %v395, 1.442695
  %v397 = vpow.pop %v396
  %v398 = vadd.f32 %v397, 1.0
  %v399 = vrcp.pop %v398
  %v400 = vmul.f32 %v398, %v399
  %v401 = vsub.f32 1.0, %v400
  %v402 = vmul.f32 %v399, %v401
  %v403 = vadd.f32 %v399, %v402
  %vm404 = vweird.f32 %v398
  %vm405 = vweird.f32 %v399
  %vm406 = vmor %vm404, %vm405
  %v407 = vsel %vm406, %v399, %v403
  %v408 = vand.u32 2147483647, %v398
  %vm409 = vcmp.eq.f32.partialorder %v408, 8.507059e+37
  %v410 = vand.u32 %v398, 2147483648
  %v411 = vor.u32 1.1754944e-38, %v410
  %v412 = vsel %vm409, %v411, %v407
  %v413 = vmul.f32 1.0, %v412
  %v414 = vtanh.pop %v394
  %v415 = vmul.f32 %v413, %v362
  %417 = vrot.lane.b32.xlu0 %v414, 64
  %v418 = vpop.permute.xlu0 %417
  %v420 = vmul.f32 %v413, %v418
  %422 = vrot.lane.b32.xlu0 %v420, 32
  %v423 = vpop.permute.xlu0 %422
  %v425 = vadd.f32 %v415, %v423
  %v426 = vtanh.pop %v425
  %428 = vrot.lane.b32.xlu0 %v426, 64
  %v429 = vpop.permute.xlu0 %428
  %v431 = vmul.f32 %v413, %v429
  %433 = vrot.lane.b32.xlu0 %v431, 32
  %v434 = vpop.permute.xlu0 %433
  %v435 = vsel %vm118, %v434, 0
  %437 = vmatpush.msra.mxu0 0.0
  %438 = vmatpush.msra.mxu0 0.0
  %439 = vmatpush.msra.mxu0 0.0
  %440 = vmatpush.msra.mxu0 0.0
  %441 = vmatpush.msra.mxu0 0.0
  %442 = vmatpush.msra.mxu0 0.0
  %443 = vmatpush.msra.mxu0 0.0
  %444 = vmatpush.msra.mxu0 0.0
  %445 = vmatpush.msra.mxu0 0.0
  %446 = vmatpush.msra.mxu0 0.0
  %447 = vmatpush.msra.mxu0 0.0
  %448 = vmatpush.msra.mxu0 0.0
  %449 = vmatpush.msra.mxu0 %v47
  %450 = vmatpush.msra.mxu0 %v46
  %451 = vmatpush.msra.mxu0 %v45
  %452 = vmatpush.msra.mxu0 %v44
  %453 = vmatmul.f32.gmra.mxu0 %v435
  %v454 = vpop.f32.mrf.mxu0
  %v455 = vadd.f32 0.0, %v454
  %456 = vdwg.mxu0
  %v457 = vadd.f32 %v110, %v455
  %v458 = vxor.u32 %v457, 2147483648
  %v459 = vmul.f32 %v458, 1.442695
  %v460 = vpow.pop %v459
  %v461 = vadd.f32 %v460, 1.0
  %v462 = vrcp.pop %v461
  %v463 = vmul.f32 %v461, %v462
  %v464 = vsub.f32 1.0, %v463
  %v465 = vmul.f32 %v462, %v464
  %v466 = vadd.f32 %v462, %v465
  %vm467 = vweird.f32 %v461
  %vm468 = vweird.f32 %v462
  %vm469 = vmor %vm467, %vm468
  %v470 = vsel %vm469, %v462, %v466
  %v471 = vand.u32 2147483647, %v461
  %vm472 = vcmp.eq.f32.partialorder %v471, 8.507059e+37
  %v473 = vand.u32 %v461, 2147483648
  %v474 = vor.u32 1.1754944e-38, %v473
  %v475 = vsel %vm472, %v474, %v470
  %v476 = vmul.f32 1.0, %v475
  %v477 = vtanh.pop %v457
  %v478 = vmul.f32 %v476, %v425
  %480 = vrot.lane.b32.xlu0 %v477, 64
  %v481 = vpop.permute.xlu0 %480
  %v483 = vmul.f32 %v476, %v481
  %485 = vrot.lane.b32.xlu0 %v483, 32
  %v486 = vpop.permute.xlu0 %485
  %v488 = vadd.f32 %v478, %v486
  %v489 = vtanh.pop %v488
  %491 = vrot.lane.b32.xlu0 %v489, 64
  %v492 = vpop.permute.xlu0 %491
  %v494 = vmul.f32 %v476, %v492
  %496 = vrot.lane.b32.xlu0 %v494, 32
  %v497 = vpop.permute.xlu0 %496
  %v498 = vsel %vm118, %v497, 0
  %500 = vmatpush.msra.mxu0 0.0
  %501 = vmatpush.msra.mxu0 0.0
  %502 = vmatpush.msra.mxu0 0.0
  %503 = vmatpush.msra.mxu0 0.0
  %504 = vmatpush.msra.mxu0 0.0
  %505 = vmatpush.msra.mxu0 0.0
  %506 = vmatpush.msra.mxu0 0.0
  %507 = vmatpush.msra.mxu0 0.0
  %508 = vmatpush.msra.mxu0 0.0
  %509 = vmatpush.msra.mxu0 0.0
  %510 = vmatpush.msra.mxu0 0.0
  %511 = vmatpush.msra.mxu0 0.0
  %512 = vmatpush.msra.mxu0 %v47
  %513 = vmatpush.msra.mxu0 %v46
  %514 = vmatpush.msra.mxu0 %v45
  %515 = vmatpush.msra.mxu0 %v44
  %516 = vmatmul.f32.gmra.mxu0 %v498
  %v517 = vpop.f32.mrf.mxu0
  %v518 = vadd.f32 0.0, %v517
  %519 = vdwg.mxu0
  %v520 = vadd.f32 %v113, %v518
  %v521 = vxor.u32 %v520, 2147483648
  %v522 = vmul.f32 %v521, 1.442695
  %v523 = vpow.pop %v522
  %v524 = vadd.f32 %v523, 1.0
  %v525 = vrcp.pop %v524
  %v526 = vmul.f32 %v524, %v525
  %v527 = vsub.f32 1.0, %v526
  %v528 = vmul.f32 %v525, %v527
  %v529 = vadd.f32 %v525, %v528
  %vm530 = vweird.f32 %v524
  %vm531 = vweird.f32 %v525
  %vm532 = vmor %vm530, %vm531
  %v533 = vsel %vm532, %v525, %v529
  %v534 = vand.u32 2147483647, %v524
  %vm535 = vcmp.eq.f32.partialorder %v534, 8.507059e+37
  %v536 = vand.u32 %v524, 2147483648
  %v537 = vor.u32 1.1754944e-38, %v536
  %v538 = vsel %vm535, %v537, %v533
  %v539 = vmul.f32 1.0, %v538
  %v540 = vtanh.pop %v520
  %v541 = vmul.f32 %v539, %v488
  %543 = vrot.lane.b32.xlu0 %v540, 64
  %v544 = vpop.permute.xlu0 %543
  %v546 = vmul.f32 %v539, %v544
  %548 = vrot.lane.b32.xlu0 %v546, 32
  %v549 = vpop.permute.xlu0 %548
  %v551 = vadd.f32 %v541, %v549
  %v552 = vtanh.pop %v551
  %554 = vrot.lane.b32.xlu0 %v552, 64
  %v555 = vpop.permute.xlu0 %554
  %v557 = vmul.f32 %v539, %v555
  %559 = vrot.lane.b32.xlu0 %v557, 32
  %v560 = vpop.permute.xlu0 %559
  %v561 = vsel %vm118, %v560, 0
  %563 = vmatpush.msra.mxu0 0.0
  %564 = vmatpush.msra.mxu0 0.0
  %565 = vmatpush.msra.mxu0 0.0
  %566 = vmatpush.msra.mxu0 0.0
  %567 = vmatpush.msra.mxu0 0.0
  %568 = vmatpush.msra.mxu0 0.0
  %569 = vmatpush.msra.mxu0 0.0
  %570 = vmatpush.msra.mxu0 0.0
  %571 = vmatpush.msra.mxu0 0.0
  %572 = vmatpush.msra.mxu0 0.0
  %573 = vmatpush.msra.mxu0 0.0
  %574 = vmatpush.msra.mxu0 0.0
  %575 = vmatpush.msra.mxu0 %v47
  %576 = vmatpush.msra.mxu0 %v46
  %577 = vmatpush.msra.mxu0 %v45
  %578 = vmatpush.msra.mxu0 %v44
  %579 = vmatmul.f32.gmra.mxu0 %v561
  %v580 = vpop.f32.mrf.mxu0
  %v581 = vadd.f32 0.0, %v580
  %582 = vdwg.mxu0
  %v583 = vadd.f32 %v116, %v581
  %v584 = vxor.u32 %v583, 2147483648
  %v585 = vmul.f32 %v584, 1.442695
  %v586 = vpow.pop %v585
  %v587 = vadd.f32 %v586, 1.0
  %v588 = vrcp.pop %v587
  %v589 = vmul.f32 %v587, %v588
  %v590 = vsub.f32 1.0, %v589
  %v591 = vmul.f32 %v588, %v590
  %v592 = vadd.f32 %v588, %v591
  %vm593 = vweird.f32 %v587
  %vm594 = vweird.f32 %v588
  %vm595 = vmor %vm593, %vm594
  %v596 = vsel %vm595, %v588, %v592
  %v597 = vand.u32 2147483647, %v587
  %vm598 = vcmp.eq.f32.partialorder %v597, 8.507059e+37
  %v599 = vand.u32 %v587, 2147483648
  %v600 = vor.u32 1.1754944e-38, %v599
  %v601 = vsel %vm598, %v600, %v596
  %v602 = vmul.f32 1.0, %v601
  %v603 = vtanh.pop %v583
  %v604 = vmul.f32 %v602, %v551
  %606 = vrot.lane.b32.xlu0 %v603, 64
  %v607 = vpop.permute.xlu0 %606
  %v609 = vmul.f32 %v602, %v607
  %611 = vrot.lane.b32.xlu0 %v609, 32
  %v612 = vpop.permute.xlu0 %611
  %v614 = vadd.f32 %v604, %v612
  %v615 = vtanh.pop %v614
  %617 = vrot.lane.b32.xlu0 %v615, 64
  %v618 = vpop.permute.xlu0 %617
  %v620 = vmul.f32 %v602, %v618
  %v621 = vld [vmem:[%s4] sm:$0xff]
  %v622 = vld [vmem:[%s4 + $0x8] sm:$0xff]
  %v623 = vld [vmem:[%s4 + $0x10] sm:$0xff]
  %v624 = vld [vmem:[%s4 + $0x18] sm:$0xff]
  %v625 = vld [vmem:[%s5] sm:$0xff]
  %v626 = vld [vmem:[%s5 + $0x8] sm:$0xff]
  %v627 = vld [vmem:[%s5 + $0x10] sm:$0xff]
  %v628 = vld [vmem:[%s5 + $0x18] sm:$0xff]
  %v629 = vld [vmem:[%s6] sm:$0x1]
  %v631 = vperm.slane %v629, 0
  %634 = vrot.lane.b32.xlu0 %v620, 32
  %v635 = vpop.permute.xlu0 %634
  %v636 = vsel %vm118, %v635, 0
  %638 = vmatpush.msra.mxu0 0.0
  %639 = vmatpush.msra.mxu0 0.0
  %640 = vmatpush.msra.mxu0 0.0
  %641 = vmatpush.msra.mxu0 0.0
  %642 = vmatpush.msra.mxu0 0.0
  %643 = vmatpush.msra.mxu0 0.0
  %644 = vmatpush.msra.mxu0 0.0
  %645 = vmatpush.msra.mxu0 0.0
  %646 = vmatpush.msra.mxu0 0.0
  %647 = vmatpush.msra.mxu0 0.0
  %648 = vmatpush.msra.mxu0 0.0
  %649 = vmatpush.msra.mxu0 0.0
  %650 = vmatpush.msra.mxu0 %v624
  %651 = vmatpush.msra.mxu0 %v623
  %652 = vmatpush.msra.mxu0 %v622
  %653 = vmatpush.msra.mxu0 %v621
  %654 = vmatmul.f32.gmra.mxu0 %v183
  %v655 = vpop.f32.mrf.mxu0
  %v656 = vadd.f32 %v631, %v655
  %657 = vmatmul.f32.gmra.mxu0 %v246
  %v658 = vpop.f32.mrf.mxu0
  %v659 = vadd.f32 %v631, %v658
  %660 = vmatmul.f32.gmra.mxu0 %v309
  %v661 = vpop.f32.mrf.mxu0
  %v662 = vadd.f32 %v631, %v661
  %663 = vmatmul.f32.gmra.mxu0 %v372
  %v664 = vpop.f32.mrf.mxu0
  %v665 = vadd.f32 %v631, %v664
  %666 = vmatmul.f32.gmra.mxu0 %v435
  %v667 = vpop.f32.mrf.mxu0
  %v668 = vadd.f32 %v631, %v667
  %669 = vmatmul.f32.gmra.mxu0 %v498
  %v670 = vpop.f32.mrf.mxu0
  %v671 = vadd.f32 %v631, %v670
  %672 = vmatmul.f32.gmra.mxu0 %v561
  %v673 = vpop.f32.mrf.mxu0
  %v674 = vadd.f32 %v631, %v673
  %675 = vmatmul.f32.gmra.mxu0 %v636
  %v676 = vpop.f32.mrf.mxu0
  %v677 = vadd.f32 %v631, %v676
  %678 = vdwg.mxu0
  %679 = vmatpush.msra.mxu0 0.0
  %680 = vmatpush.msra.mxu0 0.0
  %681 = vmatpush.msra.mxu0 0.0
  %682 = vmatpush.msra.mxu0 0.0
  %683 = vmatpush.msra.mxu0 0.0
  %684 = vmatpush.msra.mxu0 0.0
  %685 = vmatpush.msra.mxu0 0.0
  %686 = vmatpush.msra.mxu0 0.0
  %687 = vmatpush.msra.mxu0 0.0
  %688 = vmatpush.msra.mxu0 0.0
  %689 = vmatpush.msra.mxu0 0.0
  %690 = vmatpush.msra.mxu0 0.0
  %691 = vmatpush.msra.mxu0 %v628
  %692 = vmatpush.msra.mxu0 %v627
  %693 = vmatpush.msra.mxu0 %v626
  %694 = vmatpush.msra.mxu0 %v625
  %695 = vmatmul.f32.gmra.mxu0 %v120
  %v696 = vpop.f32.mrf.mxu0
  %v697 = vadd.f32 0.0, %v696
  %698 = vdwg.mxu0
  %v699 = vadd.f32 %v656, %v697
  %v700 = vxor.u32 %v699, 2147483648
  %v701 = vmul.f32 %v700, 1.442695
  %v702 = vpow.pop %v701
  %v703 = vadd.f32 %v702, 1.0
  %v704 = vrcp.pop %v703
  %v705 = vmul.f32 %v703, %v704
  %v706 = vsub.f32 1.0, %v705
  %v707 = vmul.f32 %v704, %v706
  %v708 = vadd.f32 %v704, %v707
  %vm709 = vweird.f32 %v703
  %vm710 = vweird.f32 %v704
  %vm711 = vmor %vm709, %vm710
  %v712 = vsel %vm711, %v704, %v708
  %v713 = vand.u32 2147483647, %v703
  %vm714 = vcmp.eq.f32.partialorder %v713, 8.507059e+37
  %v715 = vand.u32 %v703, 2147483648
  %v716 = vor.u32 1.1754944e-38, %v715
  %v717 = vsel %vm714, %v716, %v712
  %v718 = vmul.f32 1.0, %v717
  %v719 = vtanh.pop %v699
  %v720 = vmul.f32 %v718, 0.0
  %722 = vrot.lane.b32.xlu0 %v719, 64
  %v723 = vpop.permute.xlu0 %722
  %v725 = vmul.f32 %v718, %v723
  %727 = vrot.lane.b32.xlu0 %v725, 32
  %v728 = vpop.permute.xlu0 %727
  %v730 = vadd.f32 %v720, %v728
  %v731 = vtanh.pop %v730
  %733 = vrot.lane.b32.xlu0 %v731, 64
  %v734 = vpop.permute.xlu0 %733
  %v736 = vmul.f32 %v718, %v734
  %738 = vrot.lane.b32.xlu0 %v736, 32
  %v739 = vpop.permute.xlu0 %738
  %v740 = vsel %vm118, %v739, 0
  %742 = vmatpush.msra.mxu0 0.0
  %743 = vmatpush.msra.mxu0 0.0
  %744 = vmatpush.msra.mxu0 0.0
  %745 = vmatpush.msra.mxu0 0.0
  %746 = vmatpush.msra.mxu0 0.0
  %747 = vmatpush.msra.mxu0 0.0
  %748 = vmatpush.msra.mxu0 0.0
  %749 = vmatpush.msra.mxu0 0.0
  %750 = vmatpush.msra.mxu0 0.0
  %751 = vmatpush.msra.mxu0 0.0
  %752 = vmatpush.msra.mxu0 0.0
  %753 = vmatpush.msra.mxu0 0.0
  %754 = vmatpush.msra.mxu0 %v628
  %755 = vmatpush.msra.mxu0 %v627
  %756 = vmatpush.msra.mxu0 %v626
  %757 = vmatpush.msra.mxu0 %v625
  %758 = vmatmul.f32.gmra.mxu0 %v740
  %v759 = vpop.f32.mrf.mxu0
  %v760 = vadd.f32 0.0, %v759
  %761 = vdwg.mxu0
  %v762 = vadd.f32 %v659, %v760
  %v763 = vxor.u32 %v762, 2147483648
  %v764 = vmul.f32 %v763, 1.442695
  %v765 = vpow.pop %v764
  %v766 = vadd.f32 %v765, 1.0
  %v767 = vrcp.pop %v766
  %v768 = vmul.f32 %v766, %v767
  %v769 = vsub.f32 1.0, %v768
  %v770 = vmul.f32 %v767, %v769
  %v771 = vadd.f32 %v767, %v770
  %vm772 = vweird.f32 %v766
  %vm773 = vweird.f32 %v767
  %vm774 = vmor %vm772, %vm773
  %v775 = vsel %vm774, %v767, %v771
  %v776 = vand.u32 2147483647, %v766
  %vm777 = vcmp.eq.f32.partialorder %v776, 8.507059e+37
  %v778 = vand.u32 %v766, 2147483648
  %v779 = vor.u32 1.1754944e-38, %v778
  %v780 = vsel %vm777, %v779, %v775
  %v781 = vmul.f32 1.0, %v780
  %v782 = vtanh.pop %v762
  %v783 = vmul.f32 %v781, %v730
  %785 = vrot.lane.b32.xlu0 %v782, 64
  %v786 = vpop.permute.xlu0 %785
  %v788 = vmul.f32 %v781, %v786
  %790 = vrot.lane.b32.xlu0 %v788, 32
  %v791 = vpop.permute.xlu0 %790
  %v793 = vadd.f32 %v783, %v791
  %v794 = vtanh.pop %v793
  %796 = vrot.lane.b32.xlu0 %v794, 64
  %v797 = vpop.permute.xlu0 %796
  %v799 = vmul.f32 %v781, %v797
  %801 = vrot.lane.b32.xlu0 %v799, 32
  %v802 = vpop.permute.xlu0 %801
  %v803 = vsel %vm118, %v802, 0
  %805 = vmatpush.msra.mxu0 0.0
  %806 = vmatpush.msra.mxu0 0.0
  %807 = vmatpush.msra.mxu0 0.0
  %808 = vmatpush.msra.mxu0 0.0
  %809 = vmatpush.msra.mxu0 0.0
  %810 = vmatpush.msra.mxu0 0.0
  %811 = vmatpush.msra.mxu0 0.0
  %812 = vmatpush.msra.mxu0 0.0
  %813 = vmatpush.msra.mxu0 0.0
  %814 = vmatpush.msra.mxu0 0.0
  %815 = vmatpush.msra.mxu0 0.0
  %816 = vmatpush.msra.mxu0 0.0
  %817 = vmatpush.msra.mxu0 %v628
  %818 = vmatpush.msra.mxu0 %v627
  %819 = vmatpush.msra.mxu0 %v626
  %820 = vmatpush.msra.mxu0 %v625
  %821 = vmatmul.f32.gmra.mxu0 %v803
  %v822 = vpop.f32.mrf.mxu0
  %v823 = vadd.f32 0.0, %v822
  %824 = vdwg.mxu0
  %v825 = vadd.f32 %v662, %v823
  %v826 = vxor.u32 %v825, 2147483648
  %v827 = vmul.f32 %v826, 1.442695
  %v828 = vpow.pop %v827
  %v829 = vadd.f32 %v828, 1.0
  %v830 = vrcp.pop %v829
  %v831 = vmul.f32 %v829, %v830
  %v832 = vsub.f32 1.0, %v831
  %v833 = vmul.f32 %v830, %v832
  %v834 = vadd.f32 %v830, %v833
  %vm835 = vweird.f32 %v829
  %vm836 = vweird.f32 %v830
  %vm837 = vmor %vm835, %vm836
  %v838 = vsel %vm837, %v830, %v834
  %v839 = vand.u32 2147483647, %v829
  %vm840 = vcmp.eq.f32.partialorder %v839, 8.507059e+37
  %v841 = vand.u32 %v829, 2147483648
  %v842 = vor.u32 1.1754944e-38, %v841
  %v843 = vsel %vm840, %v842, %v838
  %v844 = vmul.f32 1.0, %v843
  %v845 = vtanh.pop %v825
  %v846 = vmul.f32 %v844, %v793
  %848 = vrot.lane.b32.xlu0 %v845, 64
  %v849 = vpop.permute.xlu0 %848
  %v851 = vmul.f32 %v844, %v849
  %853 = vrot.lane.b32.xlu0 %v851, 32
  %v854 = vpop.permute.xlu0 %853
  %v856 = vadd.f32 %v846, %v854
  %v857 = vtanh.pop %v856
  %859 = vrot.lane.b32.xlu0 %v857, 64
  %v860 = vpop.permute.xlu0 %859
  %v862 = vmul.f32 %v844, %v860
  %864 = vrot.lane.b32.xlu0 %v862, 32
  %v865 = vpop.permute.xlu0 %864
  %v866 = vsel %vm118, %v865, 0
  %868 = vmatpush.msra.mxu0 0.0
  %869 = vmatpush.msra.mxu0 0.0
  %870 = vmatpush.msra.mxu0 0.0
  %871 = vmatpush.msra.mxu0 0.0
  %872 = vmatpush.msra.mxu0 0.0
  %873 = vmatpush.msra.mxu0 0.0
  %874 = vmatpush.msra.mxu0 0.0
  %875 = vmatpush.msra.mxu0 0.0
  %876 = vmatpush.msra.mxu0 0.0
  %877 = vmatpush.msra.mxu0 0.0
  %878 = vmatpush.msra.mxu0 0.0
  %879 = vmatpush.msra.mxu0 0.0
  %880 = vmatpush.msra.mxu0 %v628
  %881 = vmatpush.msra.mxu0 %v627
  %882 = vmatpush.msra.mxu0 %v626
  %883 = vmatpush.msra.mxu0 %v625
  %884 = vmatmul.f32.gmra.mxu0 %v866
  %v885 = vpop.f32.mrf.mxu0
  %v886 = vadd.f32 0.0, %v885
  %887 = vdwg.mxu0
  %v888 = vadd.f32 %v665, %v886
  %v889 = vxor.u32 %v888, 2147483648
  %v890 = vmul.f32 %v889, 1.442695
  %v891 = vpow.pop %v890
  %v892 = vadd.f32 %v891, 1.0
  %v893 = vrcp.pop %v892
  %v894 = vmul.f32 %v892, %v893
  %v895 = vsub.f32 1.0, %v894
  %v896 = vmul.f32 %v893, %v895
  %v897 = vadd.f32 %v893, %v896
  %vm898 = vweird.f32 %v892
  %vm899 = vweird.f32 %v893
  %vm900 = vmor %vm898, %vm899
  %v901 = vsel %vm900, %v893, %v897
  %v902 = vand.u32 2147483647, %v892
  %vm903 = vcmp.eq.f32.partialorder %v902, 8.507059e+37
  %v904 = vand.u32 %v892, 2147483648
  %v905 = vor.u32 1.1754944e-38, %v904
  %v906 = vsel %vm903, %v905, %v901
  %v907 = vmul.f32 1.0, %v906
  %v908 = vtanh.pop %v888
  %v909 = vmul.f32 %v907, %v856
  %911 = vrot.lane.b32.xlu0 %v908, 64
  %v912 = vpop.permute.xlu0 %911
  %v914 = vmul.f32 %v907, %v912
  %916 = vrot.lane.b32.xlu0 %v914, 32
  %v917 = vpop.permute.xlu0 %916
  %v919 = vadd.f32 %v909, %v917
  %v920 = vtanh.pop %v919
  %922 = vrot.lane.b32.xlu0 %v920, 64
  %v923 = vpop.permute.xlu0 %922
  %v925 = vmul.f32 %v907, %v923
  %927 = vrot.lane.b32.xlu0 %v925, 32
  %v928 = vpop.permute.xlu0 %927
  %v929 = vsel %vm118, %v928, 0
  %931 = vmatpush.msra.mxu0 0.0
  %932 = vmatpush.msra.mxu0 0.0
  %933 = vmatpush.msra.mxu0 0.0
  %934 = vmatpush.msra.mxu0 0.0
  %935 = vmatpush.msra.mxu0 0.0
  %936 = vmatpush.msra.mxu0 0.0
  %937 = vmatpush.msra.mxu0 0.0
  %938 = vmatpush.msra.mxu0 0.0
  %939 = vmatpush.msra.mxu0 0.0
  %940 = vmatpush.msra.mxu0 0.0
  %941 = vmatpush.msra.mxu0 0.0
  %942 = vmatpush.msra.mxu0 0.0
  %943 = vmatpush.msra.mxu0 %v628
  %944 = vmatpush.msra.mxu0 %v627
  %945 = vmatpush.msra.mxu0 %v626
  %946 = vmatpush.msra.mxu0 %v625
  %947 = vmatmul.f32.gmra.mxu0 %v929
  %v948 = vpop.f32.mrf.mxu0
  %v949 = vadd.f32 0.0, %v948
  %950 = vdwg.mxu0
  %v951 = vadd.f32 %v668, %v949
  %v952 = vxor.u32 %v951, 2147483648
  %v953 = vmul.f32 %v952, 1.442695
  %v954 = vpow.pop %v953
  %v955 = vadd.f32 %v954, 1.0
  %v956 = vrcp.pop %v955
  %v957 = vmul.f32 %v955, %v956
  %v958 = vsub.f32 1.0, %v957
  %v959 = vmul.f32 %v956, %v958
  %v960 = vadd.f32 %v956, %v959
  %vm961 = vweird.f32 %v955
  %vm962 = vweird.f32 %v956
  %vm963 = vmor %vm961, %vm962
  %v964 = vsel %vm963, %v956, %v960
  %v965 = vand.u32 2147483647, %v955
  %vm966 = vcmp.eq.f32.partialorder %v965, 8.507059e+37
  %v967 = vand.u32 %v955, 2147483648
  %v968 = vor.u32 1.1754944e-38, %v967
  %v969 = vsel %vm966, %v968, %v964
  %v970 = vmul.f32 1.0, %v969
  %v971 = vtanh.pop %v951
  %v972 = vmul.f32 %v970, %v919
  %974 = vrot.lane.b32.xlu0 %v971, 64
  %v975 = vpop.permute.xlu0 %974
  %v977 = vmul.f32 %v970, %v975
  %979 = vrot.lane.b32.xlu0 %v977, 32
  %v980 = vpop.permute.xlu0 %979
  %v982 = vadd.f32 %v972, %v980
  %v983 = vtanh.pop %v982
  %985 = vrot.lane.b32.xlu0 %v983, 64
  %v986 = vpop.permute.xlu0 %985
  %v988 = vmul.f32 %v970, %v986
  %990 = vrot.lane.b32.xlu0 %v988, 32
  %v991 = vpop.permute.xlu0 %990
  %v992 = vsel %vm118, %v991, 0
  %994 = vmatpush.msra.mxu0 0.0
  %995 = vmatpush.msra.mxu0 0.0
  %996 = vmatpush.msra.mxu0 0.0
  %997 = vmatpush.msra.mxu0 0.0
  %998 = vmatpush.msra.mxu0 0.0
  %999 = vmatpush.msra.mxu0 0.0
  %1000 = vmatpush.msra.mxu0 0.0
  %1001 = vmatpush.msra.mxu0 0.0
  %1002 = vmatpush.msra.mxu0 0.0
  %1003 = vmatpush.msra.mxu0 0.0
  %1004 = vmatpush.msra.mxu0 0.0
  %1005 = vmatpush.msra.mxu0 0.0
  %1006 = vmatpush.msra.mxu0 %v628
  %1007 = vmatpush.msra.mxu0 %v627
  %1008 = vmatpush.msra.mxu0 %v626
  %1009 = vmatpush.msra.mxu0 %v625
  %1010 = vmatmul.f32.gmra.mxu0 %v992
  %v1011 = vpop.f32.mrf.mxu0
  %v1012 = vadd.f32 0.0, %v1011
  %1013 = vdwg.mxu0
  %v1014 = vadd.f32 %v671, %v1012
  %v1015 = vxor.u32 %v1014, 2147483648
  %v1016 = vmul.f32 %v1015, 1.442695
  %v1017 = vpow.pop %v1016
  %v1018 = vadd.f32 %v1017, 1.0
  %v1019 = vrcp.pop %v1018
  %v1020 = vmul.f32 %v1018, %v1019
  %v1021 = vsub.f32 1.0, %v1020
  %v1022 = vmul.f32 %v1019, %v1021
  %v1023 = vadd.f32 %v1019, %v1022
  %vm1024 = vweird.f32 %v1018
  %vm1025 = vweird.f32 %v1019
  %vm1026 = vmor %vm1024, %vm1025
  %v1027 = vsel %vm1026, %v1019, %v1023
  %v1028 = vand.u32 2147483647, %v1018
  %vm1029 = vcmp.eq.f32.partialorder %v1028, 8.507059e+37
  %v1030 = vand.u32 %v1018, 2147483648
  %v1031 = vor.u32 1.1754944e-38, %v1030
  %v1032 = vsel %vm1029, %v1031, %v1027
  %v1033 = vmul.f32 1.0, %v1032
  %v1034 = vtanh.pop %v1014
  %v1035 = vmul.f32 %v1033, %v982
  %1037 = vrot.lane.b32.xlu0 %v1034, 64
  %v1038 = vpop.permute.xlu0 %1037
  %v1040 = vmul.f32 %v1033, %v1038
  %1042 = vrot.lane.b32.xlu0 %v1040, 32
  %v1043 = vpop.permute.xlu0 %1042
  %v1045 = vadd.f32 %v1035, %v1043
  %v1046 = vtanh.pop %v1045
  %1048 = vrot.lane.b32.xlu0 %v1046, 64
  %v1049 = vpop.permute.xlu0 %1048
  %v1051 = vmul.f32 %v1033, %v1049
  %1053 = vrot.lane.b32.xlu0 %v1051, 32
  %v1054 = vpop.permute.xlu0 %1053
  %v1055 = vsel %vm118, %v1054, 0
  %1057 = vmatpush.msra.mxu0 0.0
  %1058 = vmatpush.msra.mxu0 0.0
  %1059 = vmatpush.msra.mxu0 0.0
  %1060 = vmatpush.msra.mxu0 0.0
  %1061 = vmatpush.msra.mxu0 0.0
  %1062 = vmatpush.msra.mxu0 0.0
  %1063 = vmatpush.msra.mxu0 0.0
  %1064 = vmatpush.msra.mxu0 0.0
  %1065 = vmatpush.msra.mxu0 0.0
  %1066 = vmatpush.msra.mxu0 0.0
  %1067 = vmatpush.msra.mxu0 0.0
  %1068 = vmatpush.msra.mxu0 0.0
  %1069 = vmatpush.msra.mxu0 %v628
  %1070 = vmatpush.msra.mxu0 %v627
  %1071 = vmatpush.msra.mxu0 %v626
  %1072 = vmatpush.msra.mxu0 %v625
  %1073 = vmatmul.f32.gmra.mxu0 %v1055
  %v1074 = vpop.f32.mrf.mxu0
  %v1075 = vadd.f32 0.0, %v1074
  %1076 = vdwg.mxu0
  %v1077 = vadd.f32 %v674, %v1075
  %v1078 = vxor.u32 %v1077, 2147483648
  %v1079 = vmul.f32 %v1078, 1.442695
  %v1080 = vpow.pop %v1079
  %v1081 = vadd.f32 %v1080, 1.0
  %v1082 = vrcp.pop %v1081
  %v1083 = vmul.f32 %v1081, %v1082
  %v1084 = vsub.f32 1.0, %v1083
  %v1085 = vmul.f32 %v1082, %v1084
  %v1086 = vadd.f32 %v1082, %v1085
  %vm1087 = vweird.f32 %v1081
  %vm1088 = vweird.f32 %v1082
  %vm1089 = vmor %vm1087, %vm1088
  %v1090 = vsel %vm1089, %v1082, %v1086
  %v1091 = vand.u32 2147483647, %v1081
  %vm1092 = vcmp.eq.f32.partialorder %v1091, 8.507059e+37
  %v1093 = vand.u32 %v1081, 2147483648
  %v1094 = vor.u32 1.1754944e-38, %v1093
  %v1095 = vsel %vm1092, %v1094, %v1090
  %v1096 = vmul.f32 1.0, %v1095
  %v1097 = vtanh.pop %v1077
  %v1098 = vmul.f32 %v1096, %v1045
  %1100 = vrot.lane.b32.xlu0 %v1097, 64
  %v1101 = vpop.permute.xlu0 %1100
  %v1103 = vmul.f32 %v1096, %v1101
  %1105 = vrot.lane.b32.xlu0 %v1103, 32
  %v1106 = vpop.permute.xlu0 %1105
  %v1108 = vadd.f32 %v1098, %v1106
  %v1109 = vtanh.pop %v1108
  %1111 = vrot.lane.b32.xlu0 %v1109, 64
  %v1112 = vpop.permute.xlu0 %1111
  %v1114 = vmul.f32 %v1096, %v1112
  %1116 = vrot.lane.b32.xlu0 %v1114, 32
  %v1117 = vpop.permute.xlu0 %1116
  %v1118 = vsel %vm118, %v1117, 0
  %1120 = vmatpush.msra.mxu0 0.0
  %1121 = vmatpush.msra.mxu0 0.0
  %1122 = vmatpush.msra.mxu0 0.0
  %1123 = vmatpush.msra.mxu0 0.0
  %1124 = vmatpush.msra.mxu0 0.0
  %1125 = vmatpush.msra.mxu0 0.0
  %1126 = vmatpush.msra.mxu0 0.0
  %1127 = vmatpush.msra.mxu0 0.0
  %1128 = vmatpush.msra.mxu0 0.0
  %1129 = vmatpush.msra.mxu0 0.0
  %1130 = vmatpush.msra.mxu0 0.0
  %1131 = vmatpush.msra.mxu0 0.0
  %1132 = vmatpush.msra.mxu0 %v628
  %1133 = vmatpush.msra.mxu0 %v627
  %1134 = vmatpush.msra.mxu0 %v626
  %1135 = vmatpush.msra.mxu0 %v625
  %1136 = vmatmul.f32.gmra.mxu0 %v1118
  %v1137 = vpop.f32.mrf.mxu0
  %v1138 = vadd.f32 0.0, %v1137
  %1139 = vdwg.mxu0
  %v1140 = vadd.f32 %v677, %v1138
  %v1141 = vxor.u32 %v1140, 2147483648
  %v1142 = vmul.f32 %v1141, 1.442695
  %v1143 = vpow.pop %v1142
  %v1144 = vadd.f32 %v1143, 1.0
  %v1145 = vrcp.pop %v1144
  %v1146 = vmul.f32 %v1144, %v1145
  %v1147 = vsub.f32 1.0, %v1146
  %v1148 = vmul.f32 %v1145, %v1147
  %v1149 = vadd.f32 %v1145, %v1148
  %vm1150 = vweird.f32 %v1144
  %vm1151 = vweird.f32 %v1145
  %vm1152 = vmor %vm1150, %vm1151
  %v1153 = vsel %vm1152, %v1145, %v1149
  %v1154 = vand.u32 2147483647, %v1144
  %vm1155 = vcmp.eq.f32.partialorder %v1154, 8.507059e+37
  %v1156 = vand.u32 %v1144, 2147483648
  %v1157 = vor.u32 1.1754944e-38, %v1156
  %v1158 = vsel %vm1155, %v1157, %v1153
  %v1159 = vmul.f32 1.0, %v1158
  %v1160 = vtanh.pop %v1140
  %v1161 = vmul.f32 %v1159, %v1108
  %1163 = vrot.lane.b32.xlu0 %v1160, 64
  %v1164 = vpop.permute.xlu0 %1163
  %v1166 = vmul.f32 %v1159, %v1164
  %1168 = vrot.lane.b32.xlu0 %v1166, 32
  %v1169 = vpop.permute.xlu0 %1168
  %v1171 = vadd.f32 %v1161, %v1169
  %v1172 = vtanh.pop %v1171
  %1174 = vrot.lane.b32.xlu0 %v1172, 64
  %v1175 = vpop.permute.xlu0 %1174
  %v1177 = vmul.f32 %v1159, %v1175
  %v1178 = vld [vmem:[%s7] sm:$0xff]
  %v1179 = vld [vmem:[%s7 + $0x8] sm:$0xff]
  %v1180 = vld [vmem:[%s7 + $0x10] sm:$0xff]
  %v1181 = vld [vmem:[%s7 + $0x18] sm:$0xff]
  %v1182 = vld [vmem:[#allocation2] sm:$0x1]
  %v1184 = vperm.slane %v1182, 0
  %1187 = vrot.lane.b32.xlu0 %v1177, 32
  %v1188 = vpop.permute.xlu0 %1187
  %v1189 = vsel %vm118, %v1188, 0
  %1191 = vmatpush.msra.mxu0 0.0
  %1192 = vmatpush.msra.mxu0 0.0
  %1193 = vmatpush.msra.mxu0 0.0
  %1194 = vmatpush.msra.mxu0 0.0
  %1195 = vmatpush.msra.mxu0 0.0
  %1196 = vmatpush.msra.mxu0 0.0
  %1197 = vmatpush.msra.mxu0 0.0
  %1198 = vmatpush.msra.mxu0 0.0
  %1199 = vmatpush.msra.mxu0 0.0
  %1200 = vmatpush.msra.mxu0 0.0
  %1201 = vmatpush.msra.mxu0 0.0
  %1202 = vmatpush.msra.mxu0 0.0
  %1203 = vmatpush.msra.mxu0 %v1181
  %1204 = vmatpush.msra.mxu0 %v1180
  %1205 = vmatpush.msra.mxu0 %v1179
  %1206 = vmatpush.msra.mxu0 %v1178
  %1207 = vmatmul.f32.gmra.mxu0 %v1189
  %v1208 = vpop.f32.mrf.mxu0
  %v1209 = vadd.f32 %v1184, %v1208
  %1210 = vdwg.mxu0
  %vm1211 = vcmask 7168
  %1212 = vst.msk [vmem:[%s9] sm:$0xff] %vm1211, %v1209
  // Predicated region
  $region38: #{bike_sharing_rnn_forward.1} parent=0 // pred_check
    _
  $region39: #{bike_sharing_rnn_forward.1} parent=0 // pred_check_branch
    %1214 = sbr.rel (0) target = $region41
  $region40: #{bike_sharing_rnn_forward.1} parent=0 // pred_region
    _
  $region41: #{bike_sharing_rnn_forward.1} parent=0 // pred_fallthru
    _
  // Predicated region
  $region42: #{bike_sharing_rnn_forward.1} parent=0 // pred_check
    _
  $region43: #{bike_sharing_rnn_forward.1} parent=0 // pred_check_branch
    %1216 = sbr.rel (0) target = $region45
  $region44: #{bike_sharing_rnn_forward.1} parent=0 // pred_region
    _
  $region45: #{bike_sharing_rnn_forward.1} parent=0 // pred_fallthru
    _

</llo_original>
